<compile_context>
chip_gen: v7x
topology: tpu7x:2x2x1
jax: 0.10.0
libtpu: 0.0.40
codegen_flags: <defaults>
</compile_context>

<pallas_src>
import jax
import jax.numpy as jnp
from jax.experimental import pallas as pl
from jax.experimental.pallas import tpu as pltpu


def gru_linear_kernel(x_ref, wih_ref, whh_ref, bgi_ref, bhn_ref, lw_ref, lb_ref, h0_ref,
                      logits_ref, hn_ref):
    """Single-layer GRU over the full sequence + one deferred Linear (padded layouts).

    x_ref      : (T*BP, E)   time-major flattened embedded tokens (row = t*BP + b)
    wih_ref    : (E, 3*HP)   input->gate weights, gate-major, each gate padded to HP lanes
    whh_ref    : (HP, 3*HP)  hidden->gate weights, same padding (rows >= H are zero)
    bgi_ref    : (1, 3*HP)   b_ih with b_hh[r], b_hh[z] pre-folded in
    bhn_ref    : (1, HP)     b_hh[n]  (must stay inside the r* term)
    lw_ref     : (HP, LP)    Linear weight, output padded to LP lanes
    lb_ref     : (1, LP)
    h0_ref     : (BP, HP)
    logits_ref : (T, BP, LP)
    hn_ref     : (BP, HP)
    """
    BP, HP = h0_ref.shape
    T, _, LP = logits_ref.shape

    # (1) Hoisted input projection: one MXU call for every timestep at once.
    gi_all = jnp.dot(x_ref[...], wih_ref[...],
                     preferred_element_type=jnp.float32) + bgi_ref[...]      # (T*BP, 3*HP)

    whh = whh_ref[...]                                                       # (HP, 3*HP)
    bhn = jnp.broadcast_to(bhn_ref[...], (BP, HP))                           # hoisted broadcast

    h = h0_ref[...]                                                          # (BP, HP)
    hs = []
    # T is small and static -> full unroll; per-step slices are static sublane-aligned views.
    for t in range(T):
        gi = gi_all[t * BP:(t + 1) * BP]                                     # (BP, 3*HP)
        gh = jnp.dot(h, whh, preferred_element_type=jnp.float32)             # (BP, 3*HP)
        # PyTorch GRU gate math (gate order r, z, n); each gate slice is a full-vreg view.
        r = jax.nn.sigmoid(gi[:, 0 * HP:1 * HP] + gh[:, 0 * HP:1 * HP])
        z = jax.nn.sigmoid(gi[:, 1 * HP:2 * HP] + gh[:, 1 * HP:2 * HP])
        n = jnp.tanh(gi[:, 2 * HP:3 * HP] + r * (gh[:, 2 * HP:3 * HP] + bhn))
        h = (1.0 - z) * n + z * h
        hs.append(h)

    hn_ref[...] = h

    # (2) Deferred Linear: one MXU call over the stacked hidden states, lane-dense store.
    hs_all = jnp.concatenate(hs, axis=0)                                     # (T*BP, HP)
    logits = jnp.dot(hs_all, lw_ref[...],
                     preferred_element_type=jnp.float32) + lb_ref[...]       # (T*BP, LP)
    logits_ref[...] = logits.reshape(T, BP, LP)


def _round_up(x, m):
    return ((x + m - 1) // m) * m


def rnn_baseline_forward(seq, params, hidden=None):
    """Mirrors RNNBaseline.forward: returns (logits (B,T,2), hidden (1,B,H))."""
    emb = params["emb"]
    B, T = seq.shape
    E = emb.shape[1]
    H = params["w_hh"].shape[1]

    BP = _round_up(B, 8)      # pad batch to the 8-sublane tile
    HP = _round_up(H, 128)    # pad each gate to full 128-lane vregs
    LP = 128                  # lane-dense logits output, sliced back to 2 in the wrapper

    f32 = jnp.float32

    # --- padded, gate-major parameters (tiny one-time prep) ------------------------------
    wih_t = params["w_ih"].astype(f32).T                  # (E, 3H), gate order [r | z | n]
    whh_t = params["w_hh"].astype(f32).T                  # (H, 3H)
    b_ih = params["b_ih"].astype(f32)
    b_hh = params["b_hh"].astype(f32)

    wih_p = jnp.zeros((E, 3 * HP), f32)
    whh_p = jnp.zeros((HP, 3 * HP), f32)
    bgi_p = jnp.zeros((1, 3 * HP), f32)
    for g in range(3):
        wih_p = wih_p.at[:, g * HP:g * HP + H].set(wih_t[:, g * H:(g + 1) * H])
        whh_p = whh_p.at[:H, g * HP:g * HP + H].set(whh_t[:, g * H:(g + 1) * H])
        bgi_p = bgi_p.at[0, g * HP:g * HP + H].set(b_ih[g * H:(g + 1) * H])
    for g in range(2):  # fold b_hh for the r and z gates into the hoisted input bias
        bgi_p = bgi_p.at[0, g * HP:g * HP + H].add(b_hh[g * H:(g + 1) * H])
    bhn_p = jnp.zeros((1, HP), f32).at[0, :H].set(b_hh[2 * H:3 * H])

    lw_p = jnp.zeros((HP, LP), f32).at[:H, :2].set(params["lin_w"].astype(f32).T)
    lb_p = jnp.zeros((1, LP), f32).at[0, :2].set(params["lin_b"].astype(f32))

    # --- activations: gather directly time-major, pad batch, flatten ---------------------
    x_tm = emb[seq.T].astype(f32)                         # (T, B, E) embedding gather (XLA glue)
    x_tm = jnp.pad(x_tm, ((0, 0), (0, BP - B), (0, 0)))   # (T, BP, E)
    x2d = x_tm.reshape(T * BP, E)                         # row = t*BP + b

    if hidden is None:
        h0_p = jnp.zeros((BP, HP), f32)
    else:
        h0_p = jnp.zeros((BP, HP), f32).at[:B, :H].set(hidden[0].astype(f32))

    vmem = pl.BlockSpec(memory_space=pltpu.MemorySpace.VMEM)
    # TODO(synk): for long sequences / large batches, tile T (and B) with a grid + BlockSpecs
    # ("arbitrary" over T, h carried in VMEM scratch) instead of whole-array VMEM residency;
    # matters on v7x's 64 MiB VMEM, irrelevant at these toy shapes.
    logits_p, hn_p = pl.pallas_call(
        gru_linear_kernel,
        out_shape=(jax.ShapeDtypeStruct((T, BP, LP), f32),
                   jax.ShapeDtypeStruct((BP, HP), f32)),
        in_specs=[vmem] * 8,
        out_specs=(vmem, vmem),
    )(x2d, wih_p, whh_p, bgi_p, bhn_p, lw_p, lb_p, h0_p)

    logits = jnp.transpose(logits_p[:, :B, :2], (1, 0, 2))  # (B, T, 2) batch-first
    hn = hn_p[:B, :H][None]                                 # (1, B, H)
    return logits, hn


def init_params(key, input_size, hidden_dim, emb_dim):
    """Deterministic synthetic parameters with PyTorch-matching shapes."""
    ks = jax.random.split(key, 7)
    k = 1.0 / jnp.sqrt(jnp.float32(hidden_dim))

    def u(kk, shape):
        return jax.random.uniform(kk, shape, jnp.float32, -k, k)

    return {
        "emb":   jax.random.normal(ks[0], (input_size, emb_dim), jnp.float32),  # nn.Embedding
        "w_ih":  u(ks[1], (3 * hidden_dim, emb_dim)),                            # GRU weight_ih_l0
        "w_hh":  u(ks[2], (3 * hidden_dim, hidden_dim)),                         # GRU weight_hh_l0
        "b_ih":  u(ks[3], (3 * hidden_dim,)),                                    # GRU bias_ih_l0
        "b_hh":  u(ks[4], (3 * hidden_dim,)),                                    # GRU bias_hh_l0
        "lin_w": u(ks[5], (2, hidden_dim)),                                      # Linear weight
        "lin_b": u(ks[6], (2,)),                                                 # Linear bias
    }


def reference_forward(seq, params, hidden=None):
    """Pure-JAX reference implementing the exact PyTorch GRU equations."""
    x = params["emb"][seq].astype(jnp.float32)
    B, T, E = x.shape
    H = params["w_hh"].shape[1]
    h = jnp.zeros((B, H), jnp.float32) if hidden is None else hidden[0]
    wih_t, whh_t = params["w_ih"].T, params["w_hh"].T
    outs = []
    for t in range(T):
        gi = x[:, t] @ wih_t + params["b_ih"]
        gh = h @ whh_t + params["b_hh"]
        r = jax.nn.sigmoid(gi[:, :H] + gh[:, :H])
        z = jax.nn.sigmoid(gi[:, H:2 * H] + gh[:, H:2 * H])
        n = jnp.tanh(gi[:, 2 * H:] + r * gh[:, 2 * H:])
        h = (1.0 - z) * n + z * h
        outs.append(h)
    out = jnp.stack(outs, axis=1)
    logits = out @ params["lin_w"].T + params["lin_b"]
    return logits, h[None]


if __name__ == "__main__":
    # Small shapes consistent with the module: vocab=20, emb_dim=16, hidden=32, B=2, T=8.
    input_size, hidden_dim, emb_dim = 20, 32, 16
    B, T = 2, 8

    key = jax.random.PRNGKey(0)
    pkey, skey = jax.random.split(key)
    params = init_params(pkey, input_size, hidden_dim, emb_dim)
    seq = jax.random.randint(skey, (B, T), 0, input_size, dtype=jnp.int32)

    logits, hidden = jax.jit(rnn_baseline_forward)(seq, params)
    jax.block_until_ready((logits, hidden))

    ref_logits, ref_hidden = reference_forward(seq, params)
    assert logits.shape == (B, T, 2) and hidden.shape == (1, B, hidden_dim)
    assert jnp.allclose(logits, ref_logits, rtol=1e-5, atol=1e-5)
    assert jnp.allclose(hidden, ref_hidden, rtol=1e-5, atol=1e-5)

    print("KERNEL_OK")
</pallas_src>

<mosaic_0001>
module attributes {stable_mosaic.version = 11 : i64} {
  func.func @gru_linear_kernel(%arg0: memref<64x16xf32, #tpu.memory_space<vmem>>, %arg1: memref<16x384xf32, #tpu.memory_space<vmem>>, %arg2: memref<128x384xf32, #tpu.memory_space<vmem>>, %arg3: memref<1x384xf32, #tpu.memory_space<vmem>>, %arg4: memref<1x128xf32, #tpu.memory_space<vmem>>, %arg5: memref<128x128xf32, #tpu.memory_space<vmem>>, %arg6: memref<1x128xf32, #tpu.memory_space<vmem>>, %arg7: memref<8x128xf32, #tpu.memory_space<vmem>>, %arg8: memref<8x8x128xf32, #tpu.memory_space<vmem>>, %arg9: memref<8x128xf32, #tpu.memory_space<vmem>>) attributes {dimension_semantics = [], scalar_prefetch = 0 : i64, scratch_operands = 0 : i64, tpu.core_type = #tpu.core_type<tc>} {
    %c0 = arith.constant 0 : index
    %c0_0 = arith.constant 0 : index
    %0 = vector.load %arg0[%c0, %c0_0] : memref<64x16xf32, #tpu.memory_space<vmem>>, vector<64x16xf32>
    %c0_1 = arith.constant 0 : index
    %c0_2 = arith.constant 0 : index
    %1 = vector.load %arg1[%c0_1, %c0_2] : memref<16x384xf32, #tpu.memory_space<vmem>>, vector<16x384xf32>
    %cst = arith.constant dense<0.000000e+00> : vector<64x384xf32>
    %2 = tpu.matmul %0, %1, %cst {dimension_numbers = #tpu.dot_dimension_numbers<[1], [0], [0], [1], [0, 0, 1, 1], [], []>} : vector<64x16xf32>, vector<16x384xf32>, vector<64x384xf32> -> vector<64x384xf32>
    %c0_3 = arith.constant 0 : index
    %c0_4 = arith.constant 0 : index
    %3 = vector.load %arg3[%c0_3, %c0_4] : memref<1x384xf32, #tpu.memory_space<vmem>>, vector<1x384xf32>
    %4 = vector.broadcast %3 : vector<1x384xf32> to vector<64x384xf32>
    %5 = arith.addf %2, %4 : vector<64x384xf32>
    %c0_5 = arith.constant 0 : index
    %c0_6 = arith.constant 0 : index
    %6 = vector.load %arg2[%c0_5, %c0_6] : memref<128x384xf32, #tpu.memory_space<vmem>>, vector<128x384xf32>
    %c0_7 = arith.constant 0 : index
    %c0_8 = arith.constant 0 : index
    %7 = vector.load %arg4[%c0_7, %c0_8] : memref<1x128xf32, #tpu.memory_space<vmem>>, vector<1x128xf32>
    %8 = vector.shape_cast %7 : vector<1x128xf32> to vector<1x128xf32>
    %9 = vector.broadcast %8 : vector<1x128xf32> to vector<8x128xf32>
    %c0_9 = arith.constant 0 : index
    %c0_10 = arith.constant 0 : index
    %10 = vector.load %arg7[%c0_9, %c0_10] : memref<8x128xf32, #tpu.memory_space<vmem>>, vector<8x128xf32>
    %11 = vector.extract_strided_slice %5 {offsets = [0, 0], sizes = [8, 384], strides = [1, 1]} : vector<64x384xf32> to vector<8x384xf32>
    %cst_11 = arith.constant dense<0.000000e+00> : vector<8x384xf32>
    %12 = tpu.matmul %10, %6, %cst_11 {dimension_numbers = #tpu.dot_dimension_numbers<[1], [0], [0], [1], [0, 0, 1, 1], [], []>} : vector<8x128xf32>, vector<128x384xf32>, vector<8x384xf32> -> vector<8x384xf32>
    %13 = vector.extract_strided_slice %11 {offsets = [0, 0], sizes = [8, 128], strides = [1, 1]} : vector<8x384xf32> to vector<8x128xf32>
    %14 = vector.extract_strided_slice %12 {offsets = [0, 0], sizes = [8, 128], strides = [1, 1]} : vector<8x384xf32> to vector<8x128xf32>
    %15 = arith.addf %13, %14 : vector<8x128xf32>
    %16 = arith.negf %15 : vector<8x128xf32>
    %17 = math.exp %16 : vector<8x128xf32>
    %cst_12 = arith.constant 1.000000e+00 : f32
    %18 = vector.broadcast %cst_12 : f32 to vector<8x128xf32>
    %19 = arith.addf %18, %17 : vector<8x128xf32>
    %20 = arith.divf %18, %19 : vector<8x128xf32>
    %21 = vector.extract_strided_slice %11 {offsets = [0, 128], sizes = [8, 128], strides = [1, 1]} : vector<8x384xf32> to vector<8x128xf32>
    %22 = vector.extract_strided_slice %12 {offsets = [0, 128], sizes = [8, 128], strides = [1, 1]} : vector<8x384xf32> to vector<8x128xf32>
    %23 = arith.addf %21, %22 : vector<8x128xf32>
    %24 = arith.negf %23 : vector<8x128xf32>
    %25 = math.exp %24 : vector<8x128xf32>
    %cst_13 = arith.constant 1.000000e+00 : f32
    %26 = vector.broadcast %cst_13 : f32 to vector<8x128xf32>
    %27 = arith.addf %26, %25 : vector<8x128xf32>
    %28 = arith.divf %26, %27 : vector<8x128xf32>
    %29 = vector.extract_strided_slice %11 {offsets = [0, 256], sizes = [8, 128], strides = [1, 1]} : vector<8x384xf32> to vector<8x128xf32>
    %30 = vector.extract_strided_slice %12 {offsets = [0, 256], sizes = [8, 128], strides = [1, 1]} : vector<8x384xf32> to vector<8x128xf32>
    %31 = arith.addf %30, %9 : vector<8x128xf32>
    %32 = arith.mulf %20, %31 : vector<8x128xf32>
    %33 = arith.addf %29, %32 : vector<8x128xf32>
    %34 = math.tanh %33 : vector<8x128xf32>
    %cst_14 = arith.constant 1.000000e+00 : f32
    %35 = vector.broadcast %cst_14 : f32 to vector<8x128xf32>
    %36 = arith.subf %35, %28 : vector<8x128xf32>
    %37 = arith.mulf %36, %34 : vector<8x128xf32>
    %38 = arith.mulf %28, %10 : vector<8x128xf32>
    %39 = arith.addf %37, %38 : vector<8x128xf32>
    %40 = vector.extract_strided_slice %5 {offsets = [8, 0], sizes = [8, 384], strides = [1, 1]} : vector<64x384xf32> to vector<8x384xf32>
    %cst_15 = arith.constant dense<0.000000e+00> : vector<8x384xf32>
    %41 = tpu.matmul %39, %6, %cst_15 {dimension_numbers = #tpu.dot_dimension_numbers<[1], [0], [0], [1], [0, 0, 1, 1], [], []>} : vector<8x128xf32>, vector<128x384xf32>, vector<8x384xf32> -> vector<8x384xf32>
    %42 = vector.extract_strided_slice %40 {offsets = [0, 0], sizes = [8, 128], strides = [1, 1]} : vector<8x384xf32> to vector<8x128xf32>
    %43 = vector.extract_strided_slice %41 {offsets = [0, 0], sizes = [8, 128], strides = [1, 1]} : vector<8x384xf32> to vector<8x128xf32>
    %44 = arith.addf %42, %43 : vector<8x128xf32>
    %45 = arith.negf %44 : vector<8x128xf32>
    %46 = math.exp %45 : vector<8x128xf32>
    %cst_16 = arith.constant 1.000000e+00 : f32
    %47 = vector.broadcast %cst_16 : f32 to vector<8x128xf32>
    %48 = arith.addf %47, %46 : vector<8x128xf32>
    %49 = arith.divf %47, %48 : vector<8x128xf32>
    %50 = vector.extract_strided_slice %40 {offsets = [0, 128], sizes = [8, 128], strides = [1, 1]} : vector<8x384xf32> to vector<8x128xf32>
    %51 = vector.extract_strided_slice %41 {offsets = [0, 128], sizes = [8, 128], strides = [1, 1]} : vector<8x384xf32> to vector<8x128xf32>
    %52 = arith.addf %50, %51 : vector<8x128xf32>
    %53 = arith.negf %52 : vector<8x128xf32>
    %54 = math.exp %53 : vector<8x128xf32>
    %cst_17 = arith.constant 1.000000e+00 : f32
    %55 = vector.broadcast %cst_17 : f32 to vector<8x128xf32>
    %56 = arith.addf %55, %54 : vector<8x128xf32>
    %57 = arith.divf %55, %56 : vector<8x128xf32>
    %58 = vector.extract_strided_slice %40 {offsets = [0, 256], sizes = [8, 128], strides = [1, 1]} : vector<8x384xf32> to vector<8x128xf32>
    %59 = vector.extract_strided_slice %41 {offsets = [0, 256], sizes = [8, 128], strides = [1, 1]} : vector<8x384xf32> to vector<8x128xf32>
    %60 = arith.addf %59, %9 : vector<8x128xf32>
    %61 = arith.mulf %49, %60 : vector<8x128xf32>
    %62 = arith.addf %58, %61 : vector<8x128xf32>
    %63 = math.tanh %62 : vector<8x128xf32>
    %cst_18 = arith.constant 1.000000e+00 : f32
    %64 = vector.broadcast %cst_18 : f32 to vector<8x128xf32>
    %65 = arith.subf %64, %57 : vector<8x128xf32>
    %66 = arith.mulf %65, %63 : vector<8x128xf32>
    %67 = arith.mulf %57, %39 : vector<8x128xf32>
    %68 = arith.addf %66, %67 : vector<8x128xf32>
    %69 = vector.extract_strided_slice %5 {offsets = [16, 0], sizes = [8, 384], strides = [1, 1]} : vector<64x384xf32> to vector<8x384xf32>
    %cst_19 = arith.constant dense<0.000000e+00> : vector<8x384xf32>
    %70 = tpu.matmul %68, %6, %cst_19 {dimension_numbers = #tpu.dot_dimension_numbers<[1], [0], [0], [1], [0, 0, 1, 1], [], []>} : vector<8x128xf32>, vector<128x384xf32>, vector<8x384xf32> -> vector<8x384xf32>
    %71 = vector.extract_strided_slice %69 {offsets = [0, 0], sizes = [8, 128], strides = [1, 1]} : vector<8x384xf32> to vector<8x128xf32>
    %72 = vector.extract_strided_slice %70 {offsets = [0, 0], sizes = [8, 128], strides = [1, 1]} : vector<8x384xf32> to vector<8x128xf32>
    %73 = arith.addf %71, %72 : vector<8x128xf32>
    %74 = arith.negf %73 : vector<8x128xf32>
    %75 = math.exp %74 : vector<8x128xf32>
    %cst_20 = arith.constant 1.000000e+00 : f32
    %76 = vector.broadcast %cst_20 : f32 to vector<8x128xf32>
    %77 = arith.addf %76, %75 : vector<8x128xf32>
    %78 = arith.divf %76, %77 : vector<8x128xf32>
    %79 = vector.extract_strided_slice %69 {offsets = [0, 128], sizes = [8, 128], strides = [1, 1]} : vector<8x384xf32> to vector<8x128xf32>
    %80 = vector.extract_strided_slice %70 {offsets = [0, 128], sizes = [8, 128], strides = [1, 1]} : vector<8x384xf32> to vector<8x128xf32>
    %81 = arith.addf %79, %80 : vector<8x128xf32>
    %82 = arith.negf %81 : vector<8x128xf32>
    %83 = math.exp %82 : vector<8x128xf32>
    %cst_21 = arith.constant 1.000000e+00 : f32
    %84 = vector.broadcast %cst_21 : f32 to vector<8x128xf32>
    %85 = arith.addf %84, %83 : vector<8x128xf32>
    %86 = arith.divf %84, %85 : vector<8x128xf32>
    %87 = vector.extract_strided_slice %69 {offsets = [0, 256], sizes = [8, 128], strides = [1, 1]} : vector<8x384xf32> to vector<8x128xf32>
    %88 = vector.extract_strided_slice %70 {offsets = [0, 256], sizes = [8, 128], strides = [1, 1]} : vector<8x384xf32> to vector<8x128xf32>
    %89 = arith.addf %88, %9 : vector<8x128xf32>
    %90 = arith.mulf %78, %89 : vector<8x128xf32>
    %91 = arith.addf %87, %90 : vector<8x128xf32>
    %92 = math.tanh %91 : vector<8x128xf32>
    %cst_22 = arith.constant 1.000000e+00 : f32
    %93 = vector.broadcast %cst_22 : f32 to vector<8x128xf32>
    %94 = arith.subf %93, %86 : vector<8x128xf32>
    %95 = arith.mulf %94, %92 : vector<8x128xf32>
    %96 = arith.mulf %86, %68 : vector<8x128xf32>
    %97 = arith.addf %95, %96 : vector<8x128xf32>
    %98 = vector.extract_strided_slice %5 {offsets = [24, 0], sizes = [8, 384], strides = [1, 1]} : vector<64x384xf32> to vector<8x384xf32>
    %cst_23 = arith.constant dense<0.000000e+00> : vector<8x384xf32>
    %99 = tpu.matmul %97, %6, %cst_23 {dimension_numbers = #tpu.dot_dimension_numbers<[1], [0], [0], [1], [0, 0, 1, 1], [], []>} : vector<8x128xf32>, vector<128x384xf32>, vector<8x384xf32> -> vector<8x384xf32>
    %100 = vector.extract_strided_slice %98 {offsets = [0, 0], sizes = [8, 128], strides = [1, 1]} : vector<8x384xf32> to vector<8x128xf32>
    %101 = vector.extract_strided_slice %99 {offsets = [0, 0], sizes = [8, 128], strides = [1, 1]} : vector<8x384xf32> to vector<8x128xf32>
    %102 = arith.addf %100, %101 : vector<8x128xf32>
    %103 = arith.negf %102 : vector<8x128xf32>
    %104 = math.exp %103 : vector<8x128xf32>
    %cst_24 = arith.constant 1.000000e+00 : f32
    %105 = vector.broadcast %cst_24 : f32 to vector<8x128xf32>
    %106 = arith.addf %105, %104 : vector<8x128xf32>
    %107 = arith.divf %105, %106 : vector<8x128xf32>
    %108 = vector.extract_strided_slice %98 {offsets = [0, 128], sizes = [8, 128], strides = [1, 1]} : vector<8x384xf32> to vector<8x128xf32>
    %109 = vector.extract_strided_slice %99 {offsets = [0, 128], sizes = [8, 128], strides = [1, 1]} : vector<8x384xf32> to vector<8x128xf32>
    %110 = arith.addf %108, %109 : vector<8x128xf32>
    %111 = arith.negf %110 : vector<8x128xf32>
    %112 = math.exp %111 : vector<8x128xf32>
    %cst_25 = arith.constant 1.000000e+00 : f32
    %113 = vector.broadcast %cst_25 : f32 to vector<8x128xf32>
    %114 = arith.addf %113, %112 : vector<8x128xf32>
    %115 = arith.divf %113, %114 : vector<8x128xf32>
    %116 = vector.extract_strided_slice %98 {offsets = [0, 256], sizes = [8, 128], strides = [1, 1]} : vector<8x384xf32> to vector<8x128xf32>
    %117 = vector.extract_strided_slice %99 {offsets = [0, 256], sizes = [8, 128], strides = [1, 1]} : vector<8x384xf32> to vector<8x128xf32>
    %118 = arith.addf %117, %9 : vector<8x128xf32>
    %119 = arith.mulf %107, %118 : vector<8x128xf32>
    %120 = arith.addf %116, %119 : vector<8x128xf32>
    %121 = math.tanh %120 : vector<8x128xf32>
    %cst_26 = arith.constant 1.000000e+00 : f32
    %122 = vector.broadcast %cst_26 : f32 to vector<8x128xf32>
    %123 = arith.subf %122, %115 : vector<8x128xf32>
    %124 = arith.mulf %123, %121 : vector<8x128xf32>
    %125 = arith.mulf %115, %97 : vector<8x128xf32>
    %126 = arith.addf %124, %125 : vector<8x128xf32>
    %127 = vector.extract_strided_slice %5 {offsets = [32, 0], sizes = [8, 384], strides = [1, 1]} : vector<64x384xf32> to vector<8x384xf32>
    %cst_27 = arith.constant dense<0.000000e+00> : vector<8x384xf32>
    %128 = tpu.matmul %126, %6, %cst_27 {dimension_numbers = #tpu.dot_dimension_numbers<[1], [0], [0], [1], [0, 0, 1, 1], [], []>} : vector<8x128xf32>, vector<128x384xf32>, vector<8x384xf32> -> vector<8x384xf32>
    %129 = vector.extract_strided_slice %127 {offsets = [0, 0], sizes = [8, 128], strides = [1, 1]} : vector<8x384xf32> to vector<8x128xf32>
    %130 = vector.extract_strided_slice %128 {offsets = [0, 0], sizes = [8, 128], strides = [1, 1]} : vector<8x384xf32> to vector<8x128xf32>
    %131 = arith.addf %129, %130 : vector<8x128xf32>
    %132 = arith.negf %131 : vector<8x128xf32>
    %133 = math.exp %132 : vector<8x128xf32>
    %cst_28 = arith.constant 1.000000e+00 : f32
    %134 = vector.broadcast %cst_28 : f32 to vector<8x128xf32>
    %135 = arith.addf %134, %133 : vector<8x128xf32>
    %136 = arith.divf %134, %135 : vector<8x128xf32>
    %137 = vector.extract_strided_slice %127 {offsets = [0, 128], sizes = [8, 128], strides = [1, 1]} : vector<8x384xf32> to vector<8x128xf32>
    %138 = vector.extract_strided_slice %128 {offsets = [0, 128], sizes = [8, 128], strides = [1, 1]} : vector<8x384xf32> to vector<8x128xf32>
    %139 = arith.addf %137, %138 : vector<8x128xf32>
    %140 = arith.negf %139 : vector<8x128xf32>
    %141 = math.exp %140 : vector<8x128xf32>
    %cst_29 = arith.constant 1.000000e+00 : f32
    %142 = vector.broadcast %cst_29 : f32 to vector<8x128xf32>
    %143 = arith.addf %142, %141 : vector<8x128xf32>
    %144 = arith.divf %142, %143 : vector<8x128xf32>
    %145 = vector.extract_strided_slice %127 {offsets = [0, 256], sizes = [8, 128], strides = [1, 1]} : vector<8x384xf32> to vector<8x128xf32>
    %146 = vector.extract_strided_slice %128 {offsets = [0, 256], sizes = [8, 128], strides = [1, 1]} : vector<8x384xf32> to vector<8x128xf32>
    %147 = arith.addf %146, %9 : vector<8x128xf32>
    %148 = arith.mulf %136, %147 : vector<8x128xf32>
    %149 = arith.addf %145, %148 : vector<8x128xf32>
    %150 = math.tanh %149 : vector<8x128xf32>
    %cst_30 = arith.constant 1.000000e+00 : f32
    %151 = vector.broadcast %cst_30 : f32 to vector<8x128xf32>
    %152 = arith.subf %151, %144 : vector<8x128xf32>
    %153 = arith.mulf %152, %150 : vector<8x128xf32>
    %154 = arith.mulf %144, %126 : vector<8x128xf32>
    %155 = arith.addf %153, %154 : vector<8x128xf32>
    %156 = vector.extract_strided_slice %5 {offsets = [40, 0], sizes = [8, 384], strides = [1, 1]} : vector<64x384xf32> to vector<8x384xf32>
    %cst_31 = arith.constant dense<0.000000e+00> : vector<8x384xf32>
    %157 = tpu.matmul %155, %6, %cst_31 {dimension_numbers = #tpu.dot_dimension_numbers<[1], [0], [0], [1], [0, 0, 1, 1], [], []>} : vector<8x128xf32>, vector<128x384xf32>, vector<8x384xf32> -> vector<8x384xf32>
    %158 = vector.extract_strided_slice %156 {offsets = [0, 0], sizes = [8, 128], strides = [1, 1]} : vector<8x384xf32> to vector<8x128xf32>
    %159 = vector.extract_strided_slice %157 {offsets = [0, 0], sizes = [8, 128], strides = [1, 1]} : vector<8x384xf32> to vector<8x128xf32>
    %160 = arith.addf %158, %159 : vector<8x128xf32>
    %161 = arith.negf %160 : vector<8x128xf32>
    %162 = math.exp %161 : vector<8x128xf32>
    %cst_32 = arith.constant 1.000000e+00 : f32
    %163 = vector.broadcast %cst_32 : f32 to vector<8x128xf32>
    %164 = arith.addf %163, %162 : vector<8x128xf32>
    %165 = arith.divf %163, %164 : vector<8x128xf32>
    %166 = vector.extract_strided_slice %156 {offsets = [0, 128], sizes = [8, 128], strides = [1, 1]} : vector<8x384xf32> to vector<8x128xf32>
    %167 = vector.extract_strided_slice %157 {offsets = [0, 128], sizes = [8, 128], strides = [1, 1]} : vector<8x384xf32> to vector<8x128xf32>
    %168 = arith.addf %166, %167 : vector<8x128xf32>
    %169 = arith.negf %168 : vector<8x128xf32>
    %170 = math.exp %169 : vector<8x128xf32>
    %cst_33 = arith.constant 1.000000e+00 : f32
    %171 = vector.broadcast %cst_33 : f32 to vector<8x128xf32>
    %172 = arith.addf %171, %170 : vector<8x128xf32>
    %173 = arith.divf %171, %172 : vector<8x128xf32>
    %174 = vector.extract_strided_slice %156 {offsets = [0, 256], sizes = [8, 128], strides = [1, 1]} : vector<8x384xf32> to vector<8x128xf32>
    %175 = vector.extract_strided_slice %157 {offsets = [0, 256], sizes = [8, 128], strides = [1, 1]} : vector<8x384xf32> to vector<8x128xf32>
    %176 = arith.addf %175, %9 : vector<8x128xf32>
    %177 = arith.mulf %165, %176 : vector<8x128xf32>
    %178 = arith.addf %174, %177 : vector<8x128xf32>
    %179 = math.tanh %178 : vector<8x128xf32>
    %cst_34 = arith.constant 1.000000e+00 : f32
    %180 = vector.broadcast %cst_34 : f32 to vector<8x128xf32>
    %181 = arith.subf %180, %173 : vector<8x128xf32>
    %182 = arith.mulf %181, %179 : vector<8x128xf32>
    %183 = arith.mulf %173, %155 : vector<8x128xf32>
    %184 = arith.addf %182, %183 : vector<8x128xf32>
    %185 = vector.extract_strided_slice %5 {offsets = [48, 0], sizes = [8, 384], strides = [1, 1]} : vector<64x384xf32> to vector<8x384xf32>
    %cst_35 = arith.constant dense<0.000000e+00> : vector<8x384xf32>
    %186 = tpu.matmul %184, %6, %cst_35 {dimension_numbers = #tpu.dot_dimension_numbers<[1], [0], [0], [1], [0, 0, 1, 1], [], []>} : vector<8x128xf32>, vector<128x384xf32>, vector<8x384xf32> -> vector<8x384xf32>
    %187 = vector.extract_strided_slice %185 {offsets = [0, 0], sizes = [8, 128], strides = [1, 1]} : vector<8x384xf32> to vector<8x128xf32>
    %188 = vector.extract_strided_slice %186 {offsets = [0, 0], sizes = [8, 128], strides = [1, 1]} : vector<8x384xf32> to vector<8x128xf32>
    %189 = arith.addf %187, %188 : vector<8x128xf32>
    %190 = arith.negf %189 : vector<8x128xf32>
    %191 = math.exp %190 : vector<8x128xf32>
    %cst_36 = arith.constant 1.000000e+00 : f32
    %192 = vector.broadcast %cst_36 : f32 to vector<8x128xf32>
    %193 = arith.addf %192, %191 : vector<8x128xf32>
    %194 = arith.divf %192, %193 : vector<8x128xf32>
    %195 = vector.extract_strided_slice %185 {offsets = [0, 128], sizes = [8, 128], strides = [1, 1]} : vector<8x384xf32> to vector<8x128xf32>
    %196 = vector.extract_strided_slice %186 {offsets = [0, 128], sizes = [8, 128], strides = [1, 1]} : vector<8x384xf32> to vector<8x128xf32>
    %197 = arith.addf %195, %196 : vector<8x128xf32>
    %198 = arith.negf %197 : vector<8x128xf32>
    %199 = math.exp %198 : vector<8x128xf32>
    %cst_37 = arith.constant 1.000000e+00 : f32
    %200 = vector.broadcast %cst_37 : f32 to vector<8x128xf32>
    %201 = arith.addf %200, %199 : vector<8x128xf32>
    %202 = arith.divf %200, %201 : vector<8x128xf32>
    %203 = vector.extract_strided_slice %185 {offsets = [0, 256], sizes = [8, 128], strides = [1, 1]} : vector<8x384xf32> to vector<8x128xf32>
    %204 = vector.extract_strided_slice %186 {offsets = [0, 256], sizes = [8, 128], strides = [1, 1]} : vector<8x384xf32> to vector<8x128xf32>
    %205 = arith.addf %204, %9 : vector<8x128xf32>
    %206 = arith.mulf %194, %205 : vector<8x128xf32>
    %207 = arith.addf %203, %206 : vector<8x128xf32>
    %208 = math.tanh %207 : vector<8x128xf32>
    %cst_38 = arith.constant 1.000000e+00 : f32
    %209 = vector.broadcast %cst_38 : f32 to vector<8x128xf32>
    %210 = arith.subf %209, %202 : vector<8x128xf32>
    %211 = arith.mulf %210, %208 : vector<8x128xf32>
    %212 = arith.mulf %202, %184 : vector<8x128xf32>
    %213 = arith.addf %211, %212 : vector<8x128xf32>
    %214 = vector.extract_strided_slice %5 {offsets = [56, 0], sizes = [8, 384], strides = [1, 1]} : vector<64x384xf32> to vector<8x384xf32>
    %cst_39 = arith.constant dense<0.000000e+00> : vector<8x384xf32>
    %215 = tpu.matmul %213, %6, %cst_39 {dimension_numbers = #tpu.dot_dimension_numbers<[1], [0], [0], [1], [0, 0, 1, 1], [], []>} : vector<8x128xf32>, vector<128x384xf32>, vector<8x384xf32> -> vector<8x384xf32>
    %216 = vector.extract_strided_slice %214 {offsets = [0, 0], sizes = [8, 128], strides = [1, 1]} : vector<8x384xf32> to vector<8x128xf32>
    %217 = vector.extract_strided_slice %215 {offsets = [0, 0], sizes = [8, 128], strides = [1, 1]} : vector<8x384xf32> to vector<8x128xf32>
    %218 = arith.addf %216, %217 : vector<8x128xf32>
    %219 = arith.negf %218 : vector<8x128xf32>
    %220 = math.exp %219 : vector<8x128xf32>
    %cst_40 = arith.constant 1.000000e+00 : f32
    %221 = vector.broadcast %cst_40 : f32 to vector<8x128xf32>
    %222 = arith.addf %221, %220 : vector<8x128xf32>
    %223 = arith.divf %221, %222 : vector<8x128xf32>
    %224 = vector.extract_strided_slice %214 {offsets = [0, 128], sizes = [8, 128], strides = [1, 1]} : vector<8x384xf32> to vector<8x128xf32>
    %225 = vector.extract_strided_slice %215 {offsets = [0, 128], sizes = [8, 128], strides = [1, 1]} : vector<8x384xf32> to vector<8x128xf32>
    %226 = arith.addf %224, %225 : vector<8x128xf32>
    %227 = arith.negf %226 : vector<8x128xf32>
    %228 = math.exp %227 : vector<8x128xf32>
    %cst_41 = arith.constant 1.000000e+00 : f32
    %229 = vector.broadcast %cst_41 : f32 to vector<8x128xf32>
    %230 = arith.addf %229, %228 : vector<8x128xf32>
    %231 = arith.divf %229, %230 : vector<8x128xf32>
    %232 = vector.extract_strided_slice %214 {offsets = [0, 256], sizes = [8, 128], strides = [1, 1]} : vector<8x384xf32> to vector<8x128xf32>
    %233 = vector.extract_strided_slice %215 {offsets = [0, 256], sizes = [8, 128], strides = [1, 1]} : vector<8x384xf32> to vector<8x128xf32>
    %234 = arith.addf %233, %9 : vector<8x128xf32>
    %235 = arith.mulf %223, %234 : vector<8x128xf32>
    %236 = arith.addf %232, %235 : vector<8x128xf32>
    %237 = math.tanh %236 : vector<8x128xf32>
    %cst_42 = arith.constant 1.000000e+00 : f32
    %238 = vector.broadcast %cst_42 : f32 to vector<8x128xf32>
    %239 = arith.subf %238, %231 : vector<8x128xf32>
    %240 = arith.mulf %239, %237 : vector<8x128xf32>
    %241 = arith.mulf %231, %213 : vector<8x128xf32>
    %242 = arith.addf %240, %241 : vector<8x128xf32>
    %c0_43 = arith.constant 0 : index
    %c0_44 = arith.constant 0 : index
    %243 = vector.load %arg9[%c0_43, %c0_44] : memref<8x128xf32, #tpu.memory_space<vmem>>, vector<8x128xf32>
    tpu.vector_store %arg9[%c0_43, %c0_44], %242 {strides = array<i32>} : memref<8x128xf32, #tpu.memory_space<vmem>>, vector<8x128xf32>,
    %244 = tpu.concatenate %39, %68, %97, %126, %155, %184, %213, %242 in 0 : vector<8x128xf32>, vector<8x128xf32>, vector<8x128xf32>, vector<8x128xf32>, vector<8x128xf32>, vector<8x128xf32>, vector<8x128xf32>, vector<8x128xf32> -> vector<64x128xf32>
    %c0_45 = arith.constant 0 : index
    %c0_46 = arith.constant 0 : index
    %245 = vector.load %arg5[%c0_45, %c0_46] : memref<128x128xf32, #tpu.memory_space<vmem>>, vector<128x128xf32>
    %cst_47 = arith.constant dense<0.000000e+00> : vector<64x128xf32>
    %246 = tpu.matmul %244, %245, %cst_47 {dimension_numbers = #tpu.dot_dimension_numbers<[1], [0], [0], [1], [0, 0, 1, 1], [], []>} : vector<64x128xf32>, vector<128x128xf32>, vector<64x128xf32> -> vector<64x128xf32>
    %c0_48 = arith.constant 0 : index
    %c0_49 = arith.constant 0 : index
    %247 = vector.load %arg6[%c0_48, %c0_49] : memref<1x128xf32, #tpu.memory_space<vmem>>, vector<1x128xf32>
    %248 = vector.broadcast %247 : vector<1x128xf32> to vector<64x128xf32>
    %249 = arith.addf %246, %248 : vector<64x128xf32>
    %250 = vector.shape_cast %249 : vector<64x128xf32> to vector<8x8x128xf32>
    %c0_50 = arith.constant 0 : index
    %c0_51 = arith.constant 0 : index
    %c0_52 = arith.constant 0 : index
    %251 = vector.load %arg8[%c0_50, %c0_51, %c0_52] : memref<8x8x128xf32, #tpu.memory_space<vmem>>, vector<8x8x128xf32>
    tpu.vector_store %arg8[%c0_50, %c0_51, %c0_52], %250 {strides = array<i32>} : memref<8x8x128xf32, #tpu.memory_space<vmem>>, vector<8x8x128xf32>,
    return
  }
}

</mosaic_0001>

<llo_original>
// kernel: rnn_baseline_forward.1
$region0: #{rnn_baseline_forward.1}
  #allocation0 [shape = 'u32[]', space=smem, size = 0x4, offset = 0x4, fixed_abs, tag = 'smem constant byte address 0x4 - core index']
  #allocation1 [shape = 'u32[144,128]{1,0:T(1,128)}', space=vmem, size = 0x12000, scoped, tag = 'internal scratch']
  %s0 = inlined_call_operand.vmem [shape: f32[64,16], index: 0, kind: input, shape index: {}]
  %s1 = inlined_call_operand.vmem [shape: f32[16,384], index: 1, kind: input, shape index: {}]
  %s2 = inlined_call_operand.vmem [shape: f32[128,384], index: 2, kind: input, shape index: {}]
  %s3 = inlined_call_operand.vmem [shape: f32[1,384], index: 3, kind: input, shape index: {}]
  %s4 = inlined_call_operand.vmem [shape: f32[1,128], index: 4, kind: input, shape index: {}]
  %s5 = inlined_call_operand.vmem [shape: f32[128,128], index: 5, kind: input, shape index: {}]
  %s6 = inlined_call_operand.vmem [shape: f32[1,128], index: 6, kind: input, shape index: {}]
  %s7 = inlined_call_operand.vmem [shape: f32[8,128], index: 7, kind: input, shape index: {}]
  %s8 = inlined_call_operand.vmem [shape: f32[8,8,128], index: 8, kind: output, shape index: {0}]
  %s9 = inlined_call_operand.vmem [shape: f32[8,128], index: 9, kind: output, shape index: {1}]
  %10 = xla_tuple %s8, %s9
  %s11 = sld [smem:[#allocation0]]
  $region50: #{rnn_baseline_forward.1} parent=0
    _
  %s13 = ssub.s32 1, %s11
  %s14 = scalar_select 0, %s13, %s11
  // Predicated region
  $region2: #{rnn_baseline_forward.1} parent=0 // pred_check
    _
  $region3: #{rnn_baseline_forward.1} parent=0 // pred_check_branch
    %16 = sbr.rel (0) target = $region5
  $region4: #{rnn_baseline_forward.1} parent=0 // pred_region
    _
  $region5: #{rnn_baseline_forward.1} parent=0 // pred_fallthru
    _
  // Predicated region
  $region6: #{rnn_baseline_forward.1} parent=0 // pred_check
    _
  $region7: #{rnn_baseline_forward.1} parent=0 // pred_check_branch
    %18 = sbr.rel (0) target = $region9
  $region8: #{rnn_baseline_forward.1} parent=0 // pred_region
    _
  $region9: #{rnn_baseline_forward.1} parent=0 // pred_fallthru
    _
  // Predicated region
  $region10: #{rnn_baseline_forward.1} parent=0 // pred_check
    _
  $region11: #{rnn_baseline_forward.1} parent=0 // pred_check_branch
    %20 = sbr.rel (0) target = $region13
  $region12: #{rnn_baseline_forward.1} parent=0 // pred_region
    _
  $region13: #{rnn_baseline_forward.1} parent=0 // pred_fallthru
    _
  // Predicated region
  $region14: #{rnn_baseline_forward.1} parent=0 // pred_check
    _
  $region15: #{rnn_baseline_forward.1} parent=0 // pred_check_branch
    %22 = sbr.rel (0) target = $region17
  $region16: #{rnn_baseline_forward.1} parent=0 // pred_region
    _
  $region17: #{rnn_baseline_forward.1} parent=0 // pred_fallthru
    _
  // Predicated region
  $region18: #{rnn_baseline_forward.1} parent=0 // pred_check
    _
  $region19: #{rnn_baseline_forward.1} parent=0 // pred_check_branch
    %24 = sbr.rel (0) target = $region21
  $region20: #{rnn_baseline_forward.1} parent=0 // pred_region
    _
  $region21: #{rnn_baseline_forward.1} parent=0 // pred_fallthru
    _
  // Predicated region
  $region22: #{rnn_baseline_forward.1} parent=0 // pred_check
    _
  $region23: #{rnn_baseline_forward.1} parent=0 // pred_check_branch
    %26 = sbr.rel (0) target = $region25
  $region24: #{rnn_baseline_forward.1} parent=0 // pred_region
    _
  $region25: #{rnn_baseline_forward.1} parent=0 // pred_fallthru
    _
  // Predicated region
  $region26: #{rnn_baseline_forward.1} parent=0 // pred_check
    _
  $region27: #{rnn_baseline_forward.1} parent=0 // pred_check_branch
    %28 = sbr.rel (0) target = $region29
  $region28: #{rnn_baseline_forward.1} parent=0 // pred_region
    _
  $region29: #{rnn_baseline_forward.1} parent=0 // pred_fallthru
    _
  // Predicated region
  $region30: #{rnn_baseline_forward.1} parent=0 // pred_check
    _
  $region31: #{rnn_baseline_forward.1} parent=0 // pred_check_branch
    %30 = sbr.rel (0) target = $region33
  $region32: #{rnn_baseline_forward.1} parent=0 // pred_region
    _
  $region33: #{rnn_baseline_forward.1} parent=0 // pred_fallthru
    _
  %v31 = vld [vmem:[%s0] sm:$0xff]
  %v32 = vld [vmem:[%s0 + $0x8] sm:$0xff]
  %v33 = vld [vmem:[%s0 + $0x10] sm:$0xff]
  %v34 = vld [vmem:[%s0 + $0x18] sm:$0xff]
  %v35 = vld [vmem:[%s0 + $0x20] sm:$0xff]
  %v36 = vld [vmem:[%s0 + $0x28] sm:$0xff]
  %v37 = vld [vmem:[%s0 + $0x30] sm:$0xff]
  %v38 = vld [vmem:[%s0 + $0x38] sm:$0xff]
  %v39 = vld [vmem:[%s1] sm:$0xff]
  %v40 = vld [vmem:[%s1 + $0x8] sm:$0xff]
  %v41 = vld [vmem:[%s1 + $0x10] sm:$0xff]
  %v42 = vld [vmem:[%s1 + $0x18] sm:$0xff]
  %v43 = vld [vmem:[%s1 + $0x20] sm:$0xff]
  %v44 = vld [vmem:[%s1 + $0x28] sm:$0xff]
  %v45 = vld [vmem:[%s3] sm:$0x7]
  %v47 = vlaneseq
  %v48 = vshrl.u32 %v47, 7
  %v49 = vsub.s32 0, %v48
  %v50 = vrot.slane %v45, %v49
  %v51 = vlaneseq
  %v52 = vshrl.u32 %v51, 7
  %v53 = vsub.s32 1, %v52
  %v54 = vrot.slane %v45, %v53
  %v55 = vlaneseq
  %v56 = vshrl.u32 %v55, 7
  %v57 = vsub.s32 2, %v56
  %v58 = vrot.slane %v45, %v57
  %vm62 = vcmask 130048
  %v64 = vsel %vm62, %v31, 0
  %v67 = vsel %vm62, %v32, 0
  %v70 = vsel %vm62, %v33, 0
  %v73 = vsel %vm62, %v34, 0
  %v76 = vsel %vm62, %v35, 0
  %v79 = vsel %vm62, %v36, 0
  %v82 = vsel %vm62, %v37, 0
  %v85 = vsel %vm62, %v38, 0
  %87 = vmatprep.subr.mxu0 %v40
  %88 = vmatpush1.msra.mxu0 %v39
  %89 = vmatprep.subr.mxu0 %v43
  %90 = vmatpush1.msra.mxu0 %v42
  %91 = vmatprep.subr.mxu0 0.0
  %92 = vmatpush1.msra.mxu0 0.0
  %93 = vmatprep.subr.mxu0 0.0
  %94 = vmatpush1.msra.mxu0 0.0
  %95 = vmatprep.subr.mxu0 0.0
  %96 = vmatpush1.msra.mxu0 0.0
  %97 = vmatprep.subr.mxu0 0.0
  %98 = vmatpush1.msra.mxu0 0.0
  %99 = vmatprep.subr.mxu0 0.0
  %100 = vmatpush1.msra.mxu0 0.0
  %101 = vmatprep.subr.mxu0 0.0
  %102 = vmatpush1.msra.mxu0 0.0
  %103 = vmatprep.subr.mxu0 0.0
  %104 = vmatpush1.msra.mxu0 0.0
  %105 = vmatprep.subr.mxu0 0.0
  %106 = vmatpush1.msra.mxu0 0.0
  %107 = vmatprep.subr.mxu0 0.0
  %108 = vmatpush1.msra.mxu0 0.0
  %109 = vmatprep.subr.mxu0 0.0
  %110 = vmatpush1.msra.mxu0 0.0
  %111 = vmatprep.subr.mxu0 0.0
  %112 = vmatpush1.msra.mxu0 0.0
  %113 = vmatprep.subr.mxu0 0.0
  %114 = vmatpush1.msra.mxu0 0.0
  %115 = vmatprep.subr.mxu0 0.0
  %116 = vmatpush1.msra.mxu0 0.0
  %117 = vmatprep.subr.mxu0 0.0
  %118 = vmatpush1.msra.mxu0 0.0
  %119 = vmatprep.subr.mxu0 0.0
  %120 = vmatpush1.msra.mxu0 0.0
  %121 = vmatprep.subr.mxu0 0.0
  %122 = vmatpush1.msra.mxu0 0.0
  %123 = vmatprep.subr.mxu0 0.0
  %124 = vmatpush1.msra.mxu0 0.0
  %125 = vmatprep.subr.mxu0 0.0
  %126 = vmatpush1.msra.mxu0 0.0
  %127 = vmatprep.subr.mxu0 0.0
  %128 = vmatpush1.msra.mxu0 0.0
  %129 = vmatprep.subr.mxu0 0.0
  %130 = vmatpush1.msra.mxu0 0.0
  %131 = vmatprep.subr.mxu0 0.0
  %132 = vmatpush1.msra.mxu0 0.0
  %133 = vmatprep.subr.mxu0 0.0
  %134 = vmatpush1.msra.mxu0 0.0
  %135 = vmatprep.subr.mxu0 0.0
  %136 = vmatpush1.msra.mxu0 0.0
  %137 = vmatprep.subr.mxu0 0.0
  %138 = vmatpush1.msra.mxu0 0.0
  %139 = vmatprep.subr.mxu0 0.0
  %140 = vmatpush1.msra.mxu0 0.0
  %141 = vmatprep.subr.mxu0 0.0
  %142 = vmatpush1.msra.mxu0 0.0
  %143 = vmatprep.subr.mxu0 0.0
  %144 = vmatpush1.msra.mxu0 0.0
  %145 = vmatprep.subr.mxu0 0.0
  %146 = vmatpush1.msra.mxu0 0.0
  %147 = vmatprep.subr.mxu0 0.0
  %148 = vmatpush1.msra.mxu0 0.0
  %149 = vmatprep.subr.mxu0 0.0
  %150 = vmatpush1.msra.mxu0 0.0
  %151 = vmatprep.mubr.f32.mxu0 0.0
  %152 = vmatmul.mubr.f32.gmra.mrb[0].mxu0 %v64
  %v153 = vpop.f32.mrb[0].mxu0
  %v154 = vadd.f32 %v50, %v153
  %v155 = vpop.f32.mrb[0].mxu0
  %v156 = vadd.f32 %v54, %v155
  %157 = vmatprep.mubr.f32.mxu0 0.0
  %158 = vmatmul.mubr.f32.gmra.mrb[0].mxu0 %v67
  %v159 = vpop.f32.mrb[0].mxu0
  %v160 = vadd.f32 %v50, %v159
  %v161 = vpop.f32.mrb[0].mxu0
  %v162 = vadd.f32 %v54, %v161
  %163 = vmatprep.mubr.f32.mxu0 0.0
  %164 = vmatmul.mubr.f32.gmra.mrb[0].mxu0 %v70
  %v165 = vpop.f32.mrb[0].mxu0
  %v166 = vadd.f32 %v50, %v165
  %v167 = vpop.f32.mrb[0].mxu0
  %v168 = vadd.f32 %v54, %v167
  %169 = vmatprep.mubr.f32.mxu0 0.0
  %170 = vmatmul.mubr.f32.gmra.mrb[0].mxu0 %v73
  %v171 = vpop.f32.mrb[0].mxu0
  %v172 = vadd.f32 %v50, %v171
  %v173 = vpop.f32.mrb[0].mxu0
  %v174 = vadd.f32 %v54, %v173
  %175 = vmatprep.mubr.f32.mxu0 0.0
  %176 = vmatmul.mubr.f32.gmra.mrb[0].mxu0 %v76
  %v177 = vpop.f32.mrb[0].mxu0
  %v178 = vadd.f32 %v50, %v177
  %v179 = vpop.f32.mrb[0].mxu0
  %v180 = vadd.f32 %v54, %v179
  %181 = vmatprep.mubr.f32.mxu0 0.0
  %182 = vmatmul.mubr.f32.gmra.mrb[0].mxu0 %v79
  %v183 = vpop.f32.mrb[0].mxu0
  %v184 = vadd.f32 %v50, %v183
  %v185 = vpop.f32.mrb[0].mxu0
  %v186 = vadd.f32 %v54, %v185
  %187 = vmatprep.mubr.f32.mxu0 0.0
  %188 = vmatmul.mubr.f32.gmra.mrb[0].mxu0 %v82
  %v189 = vpop.f32.mrb[0].mxu0
  %v190 = vadd.f32 %v50, %v189
  %v191 = vpop.f32.mrb[0].mxu0
  %v192 = vadd.f32 %v54, %v191
  %193 = vmatprep.mubr.f32.mxu0 0.0
  %194 = vmatmul.mubr.f32.gmra.mrb[0].mxu0 %v85
  %v195 = vpop.f32.mrb[0].mxu0
  %v196 = vadd.f32 %v50, %v195
  %v197 = vpop.f32.mrb[0].mxu0
  %v198 = vadd.f32 %v54, %v197
  %199 = vdwg.mxu0
  %200 = vmatprep.subr.mxu0 0.0
  %201 = vmatpush1.msra.mxu0 %v41
  %202 = vmatprep.subr.mxu0 0.0
  %203 = vmatpush1.msra.mxu0 %v44
  %204 = vmatprep.subr.mxu0 0.0
  %205 = vmatpush1.msra.mxu0 0.0
  %206 = vmatprep.subr.mxu0 0.0
  %207 = vmatpush1.msra.mxu0 0.0
  %208 = vmatprep.subr.mxu0 0.0
  %209 = vmatpush1.msra.mxu0 0.0
  %210 = vmatprep.subr.mxu0 0.0
  %211 = vmatpush1.msra.mxu0 0.0
  %212 = vmatprep.subr.mxu0 0.0
  %213 = vmatpush1.msra.mxu0 0.0
  %214 = vmatprep.subr.mxu0 0.0
  %215 = vmatpush1.msra.mxu0 0.0
  %216 = vmatprep.subr.mxu0 0.0
  %217 = vmatpush1.msra.mxu0 0.0
  %218 = vmatprep.subr.mxu0 0.0
  %219 = vmatpush1.msra.mxu0 0.0
  %220 = vmatprep.subr.mxu0 0.0
  %221 = vmatpush1.msra.mxu0 0.0
  %222 = vmatprep.subr.mxu0 0.0
  %223 = vmatpush1.msra.mxu0 0.0
  %224 = vmatprep.subr.mxu0 0.0
  %225 = vmatpush1.msra.mxu0 0.0
  %226 = vmatprep.subr.mxu0 0.0
  %227 = vmatpush1.msra.mxu0 0.0
  %228 = vmatprep.subr.mxu0 0.0
  %229 = vmatpush1.msra.mxu0 0.0
  %230 = vmatprep.subr.mxu0 0.0
  %231 = vmatpush1.msra.mxu0 0.0
  %232 = vmatprep.subr.mxu0 0.0
  %233 = vmatpush1.msra.mxu0 0.0
  %234 = vmatprep.subr.mxu0 0.0
  %235 = vmatpush1.msra.mxu0 0.0
  %236 = vmatprep.subr.mxu0 0.0
  %237 = vmatpush1.msra.mxu0 0.0
  %238 = vmatprep.subr.mxu0 0.0
  %239 = vmatpush1.msra.mxu0 0.0
  %240 = vmatprep.subr.mxu0 0.0
  %241 = vmatpush1.msra.mxu0 0.0
  %242 = vmatprep.subr.mxu0 0.0
  %243 = vmatpush1.msra.mxu0 0.0
  %244 = vmatprep.subr.mxu0 0.0
  %245 = vmatpush1.msra.mxu0 0.0
  %246 = vmatprep.subr.mxu0 0.0
  %247 = vmatpush1.msra.mxu0 0.0
  %248 = vmatprep.subr.mxu0 0.0
  %249 = vmatpush1.msra.mxu0 0.0
  %250 = vmatprep.subr.mxu0 0.0
  %251 = vmatpush1.msra.mxu0 0.0
  %252 = vmatprep.subr.mxu0 0.0
  %253 = vmatpush1.msra.mxu0 0.0
  %254 = vmatprep.subr.mxu0 0.0
  %255 = vmatpush1.msra.mxu0 0.0
  %256 = vmatprep.subr.mxu0 0.0
  %257 = vmatpush1.msra.mxu0 0.0
  %258 = vmatprep.subr.mxu0 0.0
  %259 = vmatpush1.msra.mxu0 0.0
  %260 = vmatprep.subr.mxu0 0.0
  %261 = vmatpush1.msra.mxu0 0.0
  %262 = vmatprep.subr.mxu0 0.0
  %263 = vmatpush1.msra.mxu0 0.0
  %264 = vmatprep.mubr.f32.mxu0 0.0
  %265 = vmatmul.mubr.f32.gmra.mrb[0].mxu0 %v64
  %v266 = vpop.f32.mrb[0].mxu0
  %v267 = vadd.f32 %v58, %v266
  %v268 = vpop.f32.mrb[0].mxu0
  %269 = vmatprep.mubr.f32.mxu0 0.0
  %270 = vmatmul.mubr.f32.gmra.mrb[0].mxu0 %v67
  %v271 = vpop.f32.mrb[0].mxu0
  %v272 = vadd.f32 %v58, %v271
  %v273 = vpop.f32.mrb[0].mxu0
  %274 = vmatprep.mubr.f32.mxu0 0.0
  %275 = vmatmul.mubr.f32.gmra.mrb[0].mxu0 %v70
  %v276 = vpop.f32.mrb[0].mxu0
  %v277 = vadd.f32 %v58, %v276
  %v278 = vpop.f32.mrb[0].mxu0
  %279 = vmatprep.mubr.f32.mxu0 0.0
  %280 = vmatmul.mubr.f32.gmra.mrb[0].mxu0 %v73
  %v281 = vpop.f32.mrb[0].mxu0
  %v282 = vadd.f32 %v58, %v281
  %v283 = vpop.f32.mrb[0].mxu0
  %284 = vmatprep.mubr.f32.mxu0 0.0
  %285 = vmatmul.mubr.f32.gmra.mrb[0].mxu0 %v76
  %v286 = vpop.f32.mrb[0].mxu0
  %v287 = vadd.f32 %v58, %v286
  %v288 = vpop.f32.mrb[0].mxu0
  %289 = vmatprep.mubr.f32.mxu0 0.0
  %290 = vmatmul.mubr.f32.gmra.mrb[0].mxu0 %v79
  %v291 = vpop.f32.mrb[0].mxu0
  %v292 = vadd.f32 %v58, %v291
  %v293 = vpop.f32.mrb[0].mxu0
  %294 = vmatprep.mubr.f32.mxu0 0.0
  %295 = vmatmul.mubr.f32.gmra.mrb[0].mxu0 %v82
  %v296 = vpop.f32.mrb[0].mxu0
  %v297 = vadd.f32 %v58, %v296
  %v298 = vpop.f32.mrb[0].mxu0
  %299 = vmatprep.mubr.f32.mxu0 0.0
  %300 = vmatmul.mubr.f32.gmra.mrb[0].mxu0 %v85
  %v301 = vpop.f32.mrb[0].mxu0
  %v302 = vadd.f32 %v58, %v301
  %v303 = vpop.f32.mrb[0].mxu0
  %304 = vdwg.mxu0
  %v305 = vld [vmem:[%s2] sm:$0xff]
  %v306 = vld [vmem:[%s2 + $0x8] sm:$0xff]
  %v307 = vld [vmem:[%s2 + $0x10] sm:$0xff]
  %v308 = vld [vmem:[%s2 + $0x18] sm:$0xff]
  %v309 = vld [vmem:[%s2 + $0x20] sm:$0xff]
  %v310 = vld [vmem:[%s2 + $0x28] sm:$0xff]
  %v311 = vld [vmem:[%s2 + $0x30] sm:$0xff]
  %v312 = vld [vmem:[%s2 + $0x38] sm:$0xff]
  %v313 = vld [vmem:[%s2 + $0x40] sm:$0xff]
  %v314 = vld [vmem:[%s2 + $0x48] sm:$0xff]
  %v315 = vld [vmem:[%s2 + $0x50] sm:$0xff]
  %v316 = vld [vmem:[%s2 + $0x58] sm:$0xff]
  %v317 = vld [vmem:[%s2 + $0x60] sm:$0xff]
  %v318 = vld [vmem:[%s2 + $0x68] sm:$0xff]
  %v319 = vld [vmem:[%s2 + $0x70] sm:$0xff]
  %v320 = vld [vmem:[%s2 + $0x78] sm:$0xff]
  %v321 = vld [vmem:[%s2 + $0x80] sm:$0xff]
  %v322 = vld [vmem:[%s2 + $0x88] sm:$0xff]
  %v323 = vld [vmem:[%s2 + $0x90] sm:$0xff]
  %v324 = vld [vmem:[%s2 + $0x98] sm:$0xff]
  %v325 = vld [vmem:[%s2 + $0xa0] sm:$0xff]
  %v326 = vld [vmem:[%s2 + $0xa8] sm:$0xff]
  %v327 = vld [vmem:[%s2 + $0xb0] sm:$0xff]
  %v328 = vld [vmem:[%s2 + $0xb8] sm:$0xff]
  %v329 = vld [vmem:[%s2 + $0xc0] sm:$0xff]
  %v330 = vld [vmem:[%s2 + $0xc8] sm:$0xff]
  %v331 = vld [vmem:[%s2 + $0xd0] sm:$0xff]
  %v332 = vld [vmem:[%s2 + $0xd8] sm:$0xff]
  %v333 = vld [vmem:[%s2 + $0xe0] sm:$0xff]
  %v334 = vld [vmem:[%s2 + $0xe8] sm:$0xff]
  %v335 = vld [vmem:[%s2 + $0xf0] sm:$0xff]
  %v336 = vld [vmem:[%s2 + $0xf8] sm:$0xff]
  %v337 = vld [vmem:[%s2 + $0x100] sm:$0xff]
  %v338 = vld [vmem:[%s2 + $0x108] sm:$0xff]
  %v339 = vld [vmem:[%s2 + $0x110] sm:$0xff]
  %v340 = vld [vmem:[%s2 + $0x118] sm:$0xff]
  %v341 = vld [vmem:[%s2 + $0x120] sm:$0xff]
  %v342 = vld [vmem:[%s2 + $0x128] sm:$0xff]
  %v343 = vld [vmem:[%s2 + $0x130] sm:$0xff]
  %v344 = vld [vmem:[%s2 + $0x138] sm:$0xff]
  %v345 = vld [vmem:[%s2 + $0x140] sm:$0xff]
  %v346 = vld [vmem:[%s2 + $0x148] sm:$0xff]
  %v347 = vld [vmem:[%s2 + $0x150] sm:$0xff]
  %v348 = vld [vmem:[%s2 + $0x158] sm:$0xff]
  %v349 = vld [vmem:[%s2 + $0x160] sm:$0xff]
  %v350 = vld [vmem:[%s2 + $0x168] sm:$0xff]
  %v351 = vld [vmem:[%s2 + $0x170] sm:$0xff]
  %v352 = vld [vmem:[%s2 + $0x178] sm:$0xff]
  %v353 = vld [vmem:[%s4] sm:$0x1]
  %v355 = vlaneseq
  %v356 = vshrl.u32 %v355, 7
  %v357 = vsub.s32 0, %v356
  %v358 = vrot.slane %v353, %v357
  %v360 = vld [vmem:[%s7] sm:$0xff]
  %361 = vmatprep.subr.mxu0 %v306
  %362 = vmatpush1.msra.mxu0 %v305
  %363 = vmatprep.subr.mxu0 %v309
  %364 = vmatpush1.msra.mxu0 %v308
  %365 = vmatprep.subr.mxu0 %v312
  %366 = vmatpush1.msra.mxu0 %v311
  %367 = vmatprep.subr.mxu0 %v315
  %368 = vmatpush1.msra.mxu0 %v314
  %369 = vmatprep.subr.mxu0 %v318
  %370 = vmatpush1.msra.mxu0 %v317
  %371 = vmatprep.subr.mxu0 %v321
  %372 = vmatpush1.msra.mxu0 %v320
  %373 = vmatprep.subr.mxu0 %v324
  %374 = vmatpush1.msra.mxu0 %v323
  %375 = vmatprep.subr.mxu0 %v327
  %376 = vmatpush1.msra.mxu0 %v326
  %377 = vmatprep.subr.mxu0 %v330
  %378 = vmatpush1.msra.mxu0 %v329
  %379 = vmatprep.subr.mxu0 %v333
  %380 = vmatpush1.msra.mxu0 %v332
  %381 = vmatprep.subr.mxu0 %v336
  %382 = vmatpush1.msra.mxu0 %v335
  %383 = vmatprep.subr.mxu0 %v339
  %384 = vmatpush1.msra.mxu0 %v338
  %385 = vmatprep.subr.mxu0 %v342
  %386 = vmatpush1.msra.mxu0 %v341
  %387 = vmatprep.subr.mxu0 %v345
  %388 = vmatpush1.msra.mxu0 %v344
  %389 = vmatprep.subr.mxu0 %v348
  %390 = vmatpush1.msra.mxu0 %v347
  %391 = vmatprep.subr.mxu0 %v351
  %392 = vmatpush1.msra.mxu0 %v350
  %393 = vmatprep.subr.mxu0 0.0
  %394 = vmatpush1.msra.mxu0 0.0
  %395 = vmatprep.subr.mxu0 0.0
  %396 = vmatpush1.msra.mxu0 0.0
  %397 = vmatprep.subr.mxu0 0.0
  %398 = vmatpush1.msra.mxu0 0.0
  %399 = vmatprep.subr.mxu0 0.0
  %400 = vmatpush1.msra.mxu0 0.0
  %401 = vmatprep.subr.mxu0 0.0
  %402 = vmatpush1.msra.mxu0 0.0
  %403 = vmatprep.subr.mxu0 0.0
  %404 = vmatpush1.msra.mxu0 0.0
  %405 = vmatprep.subr.mxu0 0.0
  %406 = vmatpush1.msra.mxu0 0.0
  %407 = vmatprep.subr.mxu0 0.0
  %408 = vmatpush1.msra.mxu0 0.0
  %409 = vmatprep.subr.mxu0 0.0
  %410 = vmatpush1.msra.mxu0 0.0
  %411 = vmatprep.subr.mxu0 0.0
  %412 = vmatpush1.msra.mxu0 0.0
  %413 = vmatprep.subr.mxu0 0.0
  %414 = vmatpush1.msra.mxu0 0.0
  %415 = vmatprep.subr.mxu0 0.0
  %416 = vmatpush1.msra.mxu0 0.0
  %417 = vmatprep.subr.mxu0 0.0
  %418 = vmatpush1.msra.mxu0 0.0
  %419 = vmatprep.subr.mxu0 0.0
  %420 = vmatpush1.msra.mxu0 0.0
  %421 = vmatprep.subr.mxu0 0.0
  %422 = vmatpush1.msra.mxu0 0.0
  %423 = vmatprep.subr.mxu0 0.0
  %424 = vmatpush1.msra.mxu0 0.0
  %425 = vmatprep.mubr.f32.mxu0 0.0
  %426 = vmatmul.mubr.f32.gmra.mrb[0].mxu0 %v360
  %v427 = vpop.f32.mrb[0].mxu0
  %v428 = vadd.f32 0.0, %v427
  %v429 = vpop.f32.mrb[0].mxu0
  %v430 = vadd.f32 0.0, %v429
  %431 = vdwg.mxu0
  %432 = vmatprep.subr.mxu0 0.0
  %433 = vmatpush1.msra.mxu0 %v307
  %434 = vmatprep.subr.mxu0 0.0
  %435 = vmatpush1.msra.mxu0 %v310
  %436 = vmatprep.subr.mxu0 0.0
  %437 = vmatpush1.msra.mxu0 %v313
  %438 = vmatprep.subr.mxu0 0.0
  %439 = vmatpush1.msra.mxu0 %v316
  %440 = vmatprep.subr.mxu0 0.0
  %441 = vmatpush1.msra.mxu0 %v319
  %442 = vmatprep.subr.mxu0 0.0
  %443 = vmatpush1.msra.mxu0 %v322
  %444 = vmatprep.subr.mxu0 0.0
  %445 = vmatpush1.msra.mxu0 %v325
  %446 = vmatprep.subr.mxu0 0.0
  %447 = vmatpush1.msra.mxu0 %v328
  %448 = vmatprep.subr.mxu0 0.0
  %449 = vmatpush1.msra.mxu0 %v331
  %450 = vmatprep.subr.mxu0 0.0
  %451 = vmatpush1.msra.mxu0 %v334
  %452 = vmatprep.subr.mxu0 0.0
  %453 = vmatpush1.msra.mxu0 %v337
  %454 = vmatprep.subr.mxu0 0.0
  %455 = vmatpush1.msra.mxu0 %v340
  %456 = vmatprep.subr.mxu0 0.0
  %457 = vmatpush1.msra.mxu0 %v343
  %458 = vmatprep.subr.mxu0 0.0
  %459 = vmatpush1.msra.mxu0 %v346
  %460 = vmatprep.subr.mxu0 0.0
  %461 = vmatpush1.msra.mxu0 %v349
  %462 = vmatprep.subr.mxu0 0.0
  %463 = vmatpush1.msra.mxu0 %v352
  %464 = vmatprep.subr.mxu0 0.0
  %465 = vmatpush1.msra.mxu0 0.0
  %466 = vmatprep.subr.mxu0 0.0
  %467 = vmatpush1.msra.mxu0 0.0
  %468 = vmatprep.subr.mxu0 0.0
  %469 = vmatpush1.msra.mxu0 0.0
  %470 = vmatprep.subr.mxu0 0.0
  %471 = vmatpush1.msra.mxu0 0.0
  %472 = vmatprep.subr.mxu0 0.0
  %473 = vmatpush1.msra.mxu0 0.0
  %474 = vmatprep.subr.mxu0 0.0
  %475 = vmatpush1.msra.mxu0 0.0
  %476 = vmatprep.subr.mxu0 0.0
  %477 = vmatpush1.msra.mxu0 0.0
  %478 = vmatprep.subr.mxu0 0.0
  %479 = vmatpush1.msra.mxu0 0.0
  %480 = vmatprep.subr.mxu0 0.0
  %481 = vmatpush1.msra.mxu0 0.0
  %482 = vmatprep.subr.mxu0 0.0
  %483 = vmatpush1.msra.mxu0 0.0
  %484 = vmatprep.subr.mxu0 0.0
  %485 = vmatpush1.msra.mxu0 0.0
  %486 = vmatprep.subr.mxu0 0.0
  %487 = vmatpush1.msra.mxu0 0.0
  %488 = vmatprep.subr.mxu0 0.0
  %489 = vmatpush1.msra.mxu0 0.0
  %490 = vmatprep.subr.mxu0 0.0
  %491 = vmatpush1.msra.mxu0 0.0
  %492 = vmatprep.subr.mxu0 0.0
  %493 = vmatpush1.msra.mxu0 0.0
  %494 = vmatprep.subr.mxu0 0.0
  %495 = vmatpush1.msra.mxu0 0.0
  %496 = vmatprep.mubr.f32.mxu0 0.0
  %497 = vmatmul.mubr.f32.gmra.mrb[0].mxu0 %v360
  %v498 = vpop.f32.mrb[0].mxu0
  %v499 = vadd.f32 0.0, %v498
  %v500 = vpop.f32.mrb[0].mxu0
  %501 = vdwg.mxu0
  %v502 = vadd.f32 %v154, %v428
  %v503 = vxor.u32 %v502, 2147483648
  %v504 = vmul.f32 %v503, 1.442695
  %v505 = vpow.pop %v504
  %v506 = vadd.f32 %v505, 1.0
  %v507 = vrcp.pop %v506
  %v508 = vmul.f32 1.0, %v507
  %v509 = vadd.f32 %v156, %v430
  %v510 = vxor.u32 %v509, 2147483648
  %v511 = vmul.f32 %v510, 1.442695
  %v512 = vpow.pop %v511
  %v513 = vadd.f32 %v512, 1.0
  %v514 = vrcp.pop %v513
  %v515 = vmul.f32 1.0, %v514
  %v516 = vadd.f32 %v499, %v358
  %v517 = vmul.f32 %v508, %v516
  %v518 = vadd.f32 %v267, %v517
  %v519 = vtanh.pop %v518
  %v520 = vsub.f32 1.0, %v515
  %v521 = vmul.f32 %v520, %v519
  %v522 = vmul.f32 %v515, %v360
  %v523 = vadd.f32 %v521, %v522
  %524 = vmatprep.subr.mxu0 %v306
  %525 = vmatpush1.msra.mxu0 %v305
  %526 = vmatprep.subr.mxu0 %v309
  %527 = vmatpush1.msra.mxu0 %v308
  %528 = vmatprep.subr.mxu0 %v312
  %529 = vmatpush1.msra.mxu0 %v311
  %530 = vmatprep.subr.mxu0 %v315
  %531 = vmatpush1.msra.mxu0 %v314
  %532 = vmatprep.subr.mxu0 %v318
  %533 = vmatpush1.msra.mxu0 %v317
  %534 = vmatprep.subr.mxu0 %v321
  %535 = vmatpush1.msra.mxu0 %v320
  %536 = vmatprep.subr.mxu0 %v324
  %537 = vmatpush1.msra.mxu0 %v323
  %538 = vmatprep.subr.mxu0 %v327
  %539 = vmatpush1.msra.mxu0 %v326
  %540 = vmatprep.subr.mxu0 %v330
  %541 = vmatpush1.msra.mxu0 %v329
  %542 = vmatprep.subr.mxu0 %v333
  %543 = vmatpush1.msra.mxu0 %v332
  %544 = vmatprep.subr.mxu0 %v336
  %545 = vmatpush1.msra.mxu0 %v335
  %546 = vmatprep.subr.mxu0 %v339
  %547 = vmatpush1.msra.mxu0 %v338
  %548 = vmatprep.subr.mxu0 %v342
  %549 = vmatpush1.msra.mxu0 %v341
  %550 = vmatprep.subr.mxu0 %v345
  %551 = vmatpush1.msra.mxu0 %v344
  %552 = vmatprep.subr.mxu0 %v348
  %553 = vmatpush1.msra.mxu0 %v347
  %554 = vmatprep.subr.mxu0 %v351
  %555 = vmatpush1.msra.mxu0 %v350
  %556 = vmatprep.subr.mxu0 0.0
  %557 = vmatpush1.msra.mxu0 0.0
  %558 = vmatprep.subr.mxu0 0.0
  %559 = vmatpush1.msra.mxu0 0.0
  %560 = vmatprep.subr.mxu0 0.0
  %561 = vmatpush1.msra.mxu0 0.0
  %562 = vmatprep.subr.mxu0 0.0
  %563 = vmatpush1.msra.mxu0 0.0
  %564 = vmatprep.subr.mxu0 0.0
  %565 = vmatpush1.msra.mxu0 0.0
  %566 = vmatprep.subr.mxu0 0.0
  %567 = vmatpush1.msra.mxu0 0.0
  %568 = vmatprep.subr.mxu0 0.0
  %569 = vmatpush1.msra.mxu0 0.0
  %570 = vmatprep.subr.mxu0 0.0
  %571 = vmatpush1.msra.mxu0 0.0
  %572 = vmatprep.subr.mxu0 0.0
  %573 = vmatpush1.msra.mxu0 0.0
  %574 = vmatprep.subr.mxu0 0.0
  %575 = vmatpush1.msra.mxu0 0.0
  %576 = vmatprep.subr.mxu0 0.0
  %577 = vmatpush1.msra.mxu0 0.0
  %578 = vmatprep.subr.mxu0 0.0
  %579 = vmatpush1.msra.mxu0 0.0
  %580 = vmatprep.subr.mxu0 0.0
  %581 = vmatpush1.msra.mxu0 0.0
  %582 = vmatprep.subr.mxu0 0.0
  %583 = vmatpush1.msra.mxu0 0.0
  %584 = vmatprep.subr.mxu0 0.0
  %585 = vmatpush1.msra.mxu0 0.0
  %586 = vmatprep.subr.mxu0 0.0
  %587 = vmatpush1.msra.mxu0 0.0
  %588 = vmatprep.mubr.f32.mxu0 0.0
  %589 = vmatmul.mubr.f32.gmra.mrb[0].mxu0 %v523
  %v590 = vpop.f32.mrb[0].mxu0
  %v591 = vadd.f32 0.0, %v590
  %v592 = vpop.f32.mrb[0].mxu0
  %v593 = vadd.f32 0.0, %v592
  %594 = vdwg.mxu0
  %595 = vmatprep.subr.mxu0 0.0
  %596 = vmatpush1.msra.mxu0 %v307
  %597 = vmatprep.subr.mxu0 0.0
  %598 = vmatpush1.msra.mxu0 %v310
  %599 = vmatprep.subr.mxu0 0.0
  %600 = vmatpush1.msra.mxu0 %v313
  %601 = vmatprep.subr.mxu0 0.0
  %602 = vmatpush1.msra.mxu0 %v316
  %603 = vmatprep.subr.mxu0 0.0
  %604 = vmatpush1.msra.mxu0 %v319
  %605 = vmatprep.subr.mxu0 0.0
  %606 = vmatpush1.msra.mxu0 %v322
  %607 = vmatprep.subr.mxu0 0.0
  %608 = vmatpush1.msra.mxu0 %v325
  %609 = vmatprep.subr.mxu0 0.0
  %610 = vmatpush1.msra.mxu0 %v328
  %611 = vmatprep.subr.mxu0 0.0
  %612 = vmatpush1.msra.mxu0 %v331
  %613 = vmatprep.subr.mxu0 0.0
  %614 = vmatpush1.msra.mxu0 %v334
  %615 = vmatprep.subr.mxu0 0.0
  %616 = vmatpush1.msra.mxu0 %v337
  %617 = vmatprep.subr.mxu0 0.0
  %618 = vmatpush1.msra.mxu0 %v340
  %619 = vmatprep.subr.mxu0 0.0
  %620 = vmatpush1.msra.mxu0 %v343
  %621 = vmatprep.subr.mxu0 0.0
  %622 = vmatpush1.msra.mxu0 %v346
  %623 = vmatprep.subr.mxu0 0.0
  %624 = vmatpush1.msra.mxu0 %v349
  %625 = vmatprep.subr.mxu0 0.0
  %626 = vmatpush1.msra.mxu0 %v352
  %627 = vmatprep.subr.mxu0 0.0
  %628 = vmatpush1.msra.mxu0 0.0
  %629 = vmatprep.subr.mxu0 0.0
  %630 = vmatpush1.msra.mxu0 0.0
  %631 = vmatprep.subr.mxu0 0.0
  %632 = vmatpush1.msra.mxu0 0.0
  %633 = vmatprep.subr.mxu0 0.0
  %634 = vmatpush1.msra.mxu0 0.0
  %635 = vmatprep.subr.mxu0 0.0
  %636 = vmatpush1.msra.mxu0 0.0
  %637 = vmatprep.subr.mxu0 0.0
  %638 = vmatpush1.msra.mxu0 0.0
  %639 = vmatprep.subr.mxu0 0.0
  %640 = vmatpush1.msra.mxu0 0.0
  %641 = vmatprep.subr.mxu0 0.0
  %642 = vmatpush1.msra.mxu0 0.0
  %643 = vmatprep.subr.mxu0 0.0
  %644 = vmatpush1.msra.mxu0 0.0
  %645 = vmatprep.subr.mxu0 0.0
  %646 = vmatpush1.msra.mxu0 0.0
  %647 = vmatprep.subr.mxu0 0.0
  %648 = vmatpush1.msra.mxu0 0.0
  %649 = vmatprep.subr.mxu0 0.0
  %650 = vmatpush1.msra.mxu0 0.0
  %651 = vmatprep.subr.mxu0 0.0
  %652 = vmatpush1.msra.mxu0 0.0
  %653 = vmatprep.subr.mxu0 0.0
  %654 = vmatpush1.msra.mxu0 0.0
  %655 = vmatprep.subr.mxu0 0.0
  %656 = vmatpush1.msra.mxu0 0.0
  %657 = vmatprep.subr.mxu0 0.0
  %658 = vmatpush1.msra.mxu0 0.0
  %659 = vmatprep.mubr.f32.mxu0 0.0
  %660 = vmatmul.mubr.f32.gmra.mrb[0].mxu0 %v523
  %v661 = vpop.f32.mrb[0].mxu0
  %v662 = vadd.f32 0.0, %v661
  %v663 = vpop.f32.mrb[0].mxu0
  %664 = vdwg.mxu0
  %v665 = vadd.f32 %v160, %v591
  %v666 = vxor.u32 %v665, 2147483648
  %v667 = vmul.f32 %v666, 1.442695
  %v668 = vpow.pop %v667
  %v669 = vadd.f32 %v668, 1.0
  %v670 = vrcp.pop %v669
  %v671 = vmul.f32 1.0, %v670
  %v672 = vadd.f32 %v162, %v593
  %v673 = vxor.u32 %v672, 2147483648
  %v674 = vmul.f32 %v673, 1.442695
  %v675 = vpow.pop %v674
  %v676 = vadd.f32 %v675, 1.0
  %v677 = vrcp.pop %v676
  %v678 = vmul.f32 1.0, %v677
  %v679 = vadd.f32 %v662, %v358
  %v680 = vmul.f32 %v671, %v679
  %v681 = vadd.f32 %v272, %v680
  %v682 = vtanh.pop %v681
  %v683 = vsub.f32 1.0, %v678
  %v684 = vmul.f32 %v683, %v682
  %v685 = vmul.f32 %v678, %v523
  %v686 = vadd.f32 %v684, %v685
  %687 = vmatprep.subr.mxu0 %v306
  %688 = vmatpush1.msra.mxu0 %v305
  %689 = vmatprep.subr.mxu0 %v309
  %690 = vmatpush1.msra.mxu0 %v308
  %691 = vmatprep.subr.mxu0 %v312
  %692 = vmatpush1.msra.mxu0 %v311
  %693 = vmatprep.subr.mxu0 %v315
  %694 = vmatpush1.msra.mxu0 %v314
  %695 = vmatprep.subr.mxu0 %v318
  %696 = vmatpush1.msra.mxu0 %v317
  %697 = vmatprep.subr.mxu0 %v321
  %698 = vmatpush1.msra.mxu0 %v320
  %699 = vmatprep.subr.mxu0 %v324
  %700 = vmatpush1.msra.mxu0 %v323
  %701 = vmatprep.subr.mxu0 %v327
  %702 = vmatpush1.msra.mxu0 %v326
  %703 = vmatprep.subr.mxu0 %v330
  %704 = vmatpush1.msra.mxu0 %v329
  %705 = vmatprep.subr.mxu0 %v333
  %706 = vmatpush1.msra.mxu0 %v332
  %707 = vmatprep.subr.mxu0 %v336
  %708 = vmatpush1.msra.mxu0 %v335
  %709 = vmatprep.subr.mxu0 %v339
  %710 = vmatpush1.msra.mxu0 %v338
  %711 = vmatprep.subr.mxu0 %v342
  %712 = vmatpush1.msra.mxu0 %v341
  %713 = vmatprep.subr.mxu0 %v345
  %714 = vmatpush1.msra.mxu0 %v344
  %715 = vmatprep.subr.mxu0 %v348
  %716 = vmatpush1.msra.mxu0 %v347
  %717 = vmatprep.subr.mxu0 %v351
  %718 = vmatpush1.msra.mxu0 %v350
  %719 = vmatprep.subr.mxu0 0.0
  %720 = vmatpush1.msra.mxu0 0.0
  %721 = vmatprep.subr.mxu0 0.0
  %722 = vmatpush1.msra.mxu0 0.0
  %723 = vmatprep.subr.mxu0 0.0
  %724 = vmatpush1.msra.mxu0 0.0
  %725 = vmatprep.subr.mxu0 0.0
  %726 = vmatpush1.msra.mxu0 0.0
  %727 = vmatprep.subr.mxu0 0.0
  %728 = vmatpush1.msra.mxu0 0.0
  %729 = vmatprep.subr.mxu0 0.0
  %730 = vmatpush1.msra.mxu0 0.0
  %731 = vmatprep.subr.mxu0 0.0
  %732 = vmatpush1.msra.mxu0 0.0
  %733 = vmatprep.subr.mxu0 0.0
  %734 = vmatpush1.msra.mxu0 0.0
  %735 = vmatprep.subr.mxu0 0.0
  %736 = vmatpush1.msra.mxu0 0.0
  %737 = vmatprep.subr.mxu0 0.0
  %738 = vmatpush1.msra.mxu0 0.0
  %739 = vmatprep.subr.mxu0 0.0
  %740 = vmatpush1.msra.mxu0 0.0
  %741 = vmatprep.subr.mxu0 0.0
  %742 = vmatpush1.msra.mxu0 0.0
  %743 = vmatprep.subr.mxu0 0.0
  %744 = vmatpush1.msra.mxu0 0.0
  %745 = vmatprep.subr.mxu0 0.0
  %746 = vmatpush1.msra.mxu0 0.0
  %747 = vmatprep.subr.mxu0 0.0
  %748 = vmatpush1.msra.mxu0 0.0
  %749 = vmatprep.subr.mxu0 0.0
  %750 = vmatpush1.msra.mxu0 0.0
  %751 = vmatprep.mubr.f32.mxu0 0.0
  %752 = vmatmul.mubr.f32.gmra.mrb[0].mxu0 %v686
  %v753 = vpop.f32.mrb[0].mxu0
  %v754 = vadd.f32 0.0, %v753
  %v755 = vpop.f32.mrb[0].mxu0
  %v756 = vadd.f32 0.0, %v755
  %757 = vdwg.mxu0
  %758 = vmatprep.subr.mxu0 0.0
  %759 = vmatpush1.msra.mxu0 %v307
  %760 = vmatprep.subr.mxu0 0.0
  %761 = vmatpush1.msra.mxu0 %v310
  %762 = vmatprep.subr.mxu0 0.0
  %763 = vmatpush1.msra.mxu0 %v313
  %764 = vmatprep.subr.mxu0 0.0
  %765 = vmatpush1.msra.mxu0 %v316
  %766 = vmatprep.subr.mxu0 0.0
  %767 = vmatpush1.msra.mxu0 %v319
  %768 = vmatprep.subr.mxu0 0.0
  %769 = vmatpush1.msra.mxu0 %v322
  %770 = vmatprep.subr.mxu0 0.0
  %771 = vmatpush1.msra.mxu0 %v325
  %772 = vmatprep.subr.mxu0 0.0
  %773 = vmatpush1.msra.mxu0 %v328
  %774 = vmatprep.subr.mxu0 0.0
  %775 = vmatpush1.msra.mxu0 %v331
  %776 = vmatprep.subr.mxu0 0.0
  %777 = vmatpush1.msra.mxu0 %v334
  %778 = vmatprep.subr.mxu0 0.0
  %779 = vmatpush1.msra.mxu0 %v337
  %780 = vmatprep.subr.mxu0 0.0
  %781 = vmatpush1.msra.mxu0 %v340
  %782 = vmatprep.subr.mxu0 0.0
  %783 = vmatpush1.msra.mxu0 %v343
  %784 = vmatprep.subr.mxu0 0.0
  %785 = vmatpush1.msra.mxu0 %v346
  %786 = vmatprep.subr.mxu0 0.0
  %787 = vmatpush1.msra.mxu0 %v349
  %788 = vmatprep.subr.mxu0 0.0
  %789 = vmatpush1.msra.mxu0 %v352
  %790 = vmatprep.subr.mxu0 0.0
  %791 = vmatpush1.msra.mxu0 0.0
  %792 = vmatprep.subr.mxu0 0.0
  %793 = vmatpush1.msra.mxu0 0.0
  %794 = vmatprep.subr.mxu0 0.0
  %795 = vmatpush1.msra.mxu0 0.0
  %796 = vmatprep.subr.mxu0 0.0
  %797 = vmatpush1.msra.mxu0 0.0
  %798 = vmatprep.subr.mxu0 0.0
  %799 = vmatpush1.msra.mxu0 0.0
  %800 = vmatprep.subr.mxu0 0.0
  %801 = vmatpush1.msra.mxu0 0.0
  %802 = vmatprep.subr.mxu0 0.0
  %803 = vmatpush1.msra.mxu0 0.0
  %804 = vmatprep.subr.mxu0 0.0
  %805 = vmatpush1.msra.mxu0 0.0
  %806 = vmatprep.subr.mxu0 0.0
  %807 = vmatpush1.msra.mxu0 0.0
  %808 = vmatprep.subr.mxu0 0.0
  %809 = vmatpush1.msra.mxu0 0.0
  %810 = vmatprep.subr.mxu0 0.0
  %811 = vmatpush1.msra.mxu0 0.0
  %812 = vmatprep.subr.mxu0 0.0
  %813 = vmatpush1.msra.mxu0 0.0
  %814 = vmatprep.subr.mxu0 0.0
  %815 = vmatpush1.msra.mxu0 0.0
  %816 = vmatprep.subr.mxu0 0.0
  %817 = vmatpush1.msra.mxu0 0.0
  %818 = vmatprep.subr.mxu0 0.0
  %819 = vmatpush1.msra.mxu0 0.0
  %820 = vmatprep.subr.mxu0 0.0
  %821 = vmatpush1.msra.mxu0 0.0
  %822 = vmatprep.mubr.f32.mxu0 0.0
  %823 = vmatmul.mubr.f32.gmra.mrb[0].mxu0 %v686
  %v824 = vpop.f32.mrb[0].mxu0
  %v825 = vadd.f32 0.0, %v824
  %v826 = vpop.f32.mrb[0].mxu0
  %827 = vdwg.mxu0
  %v828 = vadd.f32 %v166, %v754
  %v829 = vxor.u32 %v828, 2147483648
  %v830 = vmul.f32 %v829, 1.442695
  %v831 = vpow.pop %v830
  %v832 = vadd.f32 %v831, 1.0
  %v833 = vrcp.pop %v832
  %v834 = vmul.f32 1.0, %v833
  %v835 = vadd.f32 %v168, %v756
  %v836 = vxor.u32 %v835, 2147483648
  %v837 = vmul.f32 %v836, 1.442695
  %v838 = vpow.pop %v837
  %v839 = vadd.f32 %v838, 1.0
  %v840 = vrcp.pop %v839
  %v841 = vmul.f32 1.0, %v840
  %v842 = vadd.f32 %v825, %v358
  %v843 = vmul.f32 %v834, %v842
  %v844 = vadd.f32 %v277, %v843
  %v845 = vtanh.pop %v844
  %v846 = vsub.f32 1.0, %v841
  %v847 = vmul.f32 %v846, %v845
  %v848 = vmul.f32 %v841, %v686
  %v849 = vadd.f32 %v847, %v848
  %850 = vmatprep.subr.mxu0 %v306
  %851 = vmatpush1.msra.mxu0 %v305
  %852 = vmatprep.subr.mxu0 %v309
  %853 = vmatpush1.msra.mxu0 %v308
  %854 = vmatprep.subr.mxu0 %v312
  %855 = vmatpush1.msra.mxu0 %v311
  %856 = vmatprep.subr.mxu0 %v315
  %857 = vmatpush1.msra.mxu0 %v314
  %858 = vmatprep.subr.mxu0 %v318
  %859 = vmatpush1.msra.mxu0 %v317
  %860 = vmatprep.subr.mxu0 %v321
  %861 = vmatpush1.msra.mxu0 %v320
  %862 = vmatprep.subr.mxu0 %v324
  %863 = vmatpush1.msra.mxu0 %v323
  %864 = vmatprep.subr.mxu0 %v327
  %865 = vmatpush1.msra.mxu0 %v326
  %866 = vmatprep.subr.mxu0 %v330
  %867 = vmatpush1.msra.mxu0 %v329
  %868 = vmatprep.subr.mxu0 %v333
  %869 = vmatpush1.msra.mxu0 %v332
  %870 = vmatprep.subr.mxu0 %v336
  %871 = vmatpush1.msra.mxu0 %v335
  %872 = vmatprep.subr.mxu0 %v339
  %873 = vmatpush1.msra.mxu0 %v338
  %874 = vmatprep.subr.mxu0 %v342
  %875 = vmatpush1.msra.mxu0 %v341
  %876 = vmatprep.subr.mxu0 %v345
  %877 = vmatpush1.msra.mxu0 %v344
  %878 = vmatprep.subr.mxu0 %v348
  %879 = vmatpush1.msra.mxu0 %v347
  %880 = vmatprep.subr.mxu0 %v351
  %881 = vmatpush1.msra.mxu0 %v350
  %882 = vmatprep.subr.mxu0 0.0
  %883 = vmatpush1.msra.mxu0 0.0
  %884 = vmatprep.subr.mxu0 0.0
  %885 = vmatpush1.msra.mxu0 0.0
  %886 = vmatprep.subr.mxu0 0.0
  %887 = vmatpush1.msra.mxu0 0.0
  %888 = vmatprep.subr.mxu0 0.0
  %889 = vmatpush1.msra.mxu0 0.0
  %890 = vmatprep.subr.mxu0 0.0
  %891 = vmatpush1.msra.mxu0 0.0
  %892 = vmatprep.subr.mxu0 0.0
  %893 = vmatpush1.msra.mxu0 0.0
  %894 = vmatprep.subr.mxu0 0.0
  %895 = vmatpush1.msra.mxu0 0.0
  %896 = vmatprep.subr.mxu0 0.0
  %897 = vmatpush1.msra.mxu0 0.0
  %898 = vmatprep.subr.mxu0 0.0
  %899 = vmatpush1.msra.mxu0 0.0
  %900 = vmatprep.subr.mxu0 0.0
  %901 = vmatpush1.msra.mxu0 0.0
  %902 = vmatprep.subr.mxu0 0.0
  %903 = vmatpush1.msra.mxu0 0.0
  %904 = vmatprep.subr.mxu0 0.0
  %905 = vmatpush1.msra.mxu0 0.0
  %906 = vmatprep.subr.mxu0 0.0
  %907 = vmatpush1.msra.mxu0 0.0
  %908 = vmatprep.subr.mxu0 0.0
  %909 = vmatpush1.msra.mxu0 0.0
  %910 = vmatprep.subr.mxu0 0.0
  %911 = vmatpush1.msra.mxu0 0.0
  %912 = vmatprep.subr.mxu0 0.0
  %913 = vmatpush1.msra.mxu0 0.0
  %914 = vmatprep.mubr.f32.mxu0 0.0
  %915 = vmatmul.mubr.f32.gmra.mrb[0].mxu0 %v849
  %v916 = vpop.f32.mrb[0].mxu0
  %v917 = vadd.f32 0.0, %v916
  %v918 = vpop.f32.mrb[0].mxu0
  %v919 = vadd.f32 0.0, %v918
  %920 = vdwg.mxu0
  %921 = vmatprep.subr.mxu0 0.0
  %922 = vmatpush1.msra.mxu0 %v307
  %923 = vmatprep.subr.mxu0 0.0
  %924 = vmatpush1.msra.mxu0 %v310
  %925 = vmatprep.subr.mxu0 0.0
  %926 = vmatpush1.msra.mxu0 %v313
  %927 = vmatprep.subr.mxu0 0.0
  %928 = vmatpush1.msra.mxu0 %v316
  %929 = vmatprep.subr.mxu0 0.0
  %930 = vmatpush1.msra.mxu0 %v319
  %931 = vmatprep.subr.mxu0 0.0
  %932 = vmatpush1.msra.mxu0 %v322
  %933 = vmatprep.subr.mxu0 0.0
  %934 = vmatpush1.msra.mxu0 %v325
  %935 = vmatprep.subr.mxu0 0.0
  %936 = vmatpush1.msra.mxu0 %v328
  %937 = vmatprep.subr.mxu0 0.0
  %938 = vmatpush1.msra.mxu0 %v331
  %939 = vmatprep.subr.mxu0 0.0
  %940 = vmatpush1.msra.mxu0 %v334
  %941 = vmatprep.subr.mxu0 0.0
  %942 = vmatpush1.msra.mxu0 %v337
  %943 = vmatprep.subr.mxu0 0.0
  %944 = vmatpush1.msra.mxu0 %v340
  %945 = vmatprep.subr.mxu0 0.0
  %946 = vmatpush1.msra.mxu0 %v343
  %947 = vmatprep.subr.mxu0 0.0
  %948 = vmatpush1.msra.mxu0 %v346
  %949 = vmatprep.subr.mxu0 0.0
  %950 = vmatpush1.msra.mxu0 %v349
  %951 = vmatprep.subr.mxu0 0.0
  %952 = vmatpush1.msra.mxu0 %v352
  %953 = vmatprep.subr.mxu0 0.0
  %954 = vmatpush1.msra.mxu0 0.0
  %955 = vmatprep.subr.mxu0 0.0
  %956 = vmatpush1.msra.mxu0 0.0
  %957 = vmatprep.subr.mxu0 0.0
  %958 = vmatpush1.msra.mxu0 0.0
  %959 = vmatprep.subr.mxu0 0.0
  %960 = vmatpush1.msra.mxu0 0.0
  %961 = vmatprep.subr.mxu0 0.0
  %962 = vmatpush1.msra.mxu0 0.0
  %963 = vmatprep.subr.mxu0 0.0
  %964 = vmatpush1.msra.mxu0 0.0
  %965 = vmatprep.subr.mxu0 0.0
  %966 = vmatpush1.msra.mxu0 0.0
  %967 = vmatprep.subr.mxu0 0.0
  %968 = vmatpush1.msra.mxu0 0.0
  %969 = vmatprep.subr.mxu0 0.0
  %970 = vmatpush1.msra.mxu0 0.0
  %971 = vmatprep.subr.mxu0 0.0
  %972 = vmatpush1.msra.mxu0 0.0
  %973 = vmatprep.subr.mxu0 0.0
  %974 = vmatpush1.msra.mxu0 0.0
  %975 = vmatprep.subr.mxu0 0.0
  %976 = vmatpush1.msra.mxu0 0.0
  %977 = vmatprep.subr.mxu0 0.0
  %978 = vmatpush1.msra.mxu0 0.0
  %979 = vmatprep.subr.mxu0 0.0
  %980 = vmatpush1.msra.mxu0 0.0
  %981 = vmatprep.subr.mxu0 0.0
  %982 = vmatpush1.msra.mxu0 0.0
  %983 = vmatprep.subr.mxu0 0.0
  %984 = vmatpush1.msra.mxu0 0.0
  %985 = vmatprep.mubr.f32.mxu0 0.0
  %986 = vmatmul.mubr.f32.gmra.mrb[0].mxu0 %v849
  %v987 = vpop.f32.mrb[0].mxu0
  %v988 = vadd.f32 0.0, %v987
  %v989 = vpop.f32.mrb[0].mxu0
  %990 = vdwg.mxu0
  %v991 = vadd.f32 %v172, %v917
  %v992 = vxor.u32 %v991, 2147483648
  %v993 = vmul.f32 %v992, 1.442695
  %v994 = vpow.pop %v993
  %v995 = vadd.f32 %v994, 1.0
  %v996 = vrcp.pop %v995
  %v997 = vmul.f32 1.0, %v996
  %v998 = vadd.f32 %v174, %v919
  %v999 = vxor.u32 %v998, 2147483648
  %v1000 = vmul.f32 %v999, 1.442695
  %v1001 = vpow.pop %v1000
  %v1002 = vadd.f32 %v1001, 1.0
  %v1003 = vrcp.pop %v1002
  %v1004 = vmul.f32 1.0, %v1003
  %v1005 = vadd.f32 %v988, %v358
  %v1006 = vmul.f32 %v997, %v1005
  %v1007 = vadd.f32 %v282, %v1006
  %v1008 = vtanh.pop %v1007
  %v1009 = vsub.f32 1.0, %v1004
  %v1010 = vmul.f32 %v1009, %v1008
  %v1011 = vmul.f32 %v1004, %v849
  %v1012 = vadd.f32 %v1010, %v1011
  %1013 = vmatprep.subr.mxu0 %v306
  %1014 = vmatpush1.msra.mxu0 %v305
  %1015 = vmatprep.subr.mxu0 %v309
  %1016 = vmatpush1.msra.mxu0 %v308
  %1017 = vmatprep.subr.mxu0 %v312
  %1018 = vmatpush1.msra.mxu0 %v311
  %1019 = vmatprep.subr.mxu0 %v315
  %1020 = vmatpush1.msra.mxu0 %v314
  %1021 = vmatprep.subr.mxu0 %v318
  %1022 = vmatpush1.msra.mxu0 %v317
  %1023 = vmatprep.subr.mxu0 %v321
  %1024 = vmatpush1.msra.mxu0 %v320
  %1025 = vmatprep.subr.mxu0 %v324
  %1026 = vmatpush1.msra.mxu0 %v323
  %1027 = vmatprep.subr.mxu0 %v327
  %1028 = vmatpush1.msra.mxu0 %v326
  %1029 = vmatprep.subr.mxu0 %v330
  %1030 = vmatpush1.msra.mxu0 %v329
  %1031 = vmatprep.subr.mxu0 %v333
  %1032 = vmatpush1.msra.mxu0 %v332
  %1033 = vmatprep.subr.mxu0 %v336
  %1034 = vmatpush1.msra.mxu0 %v335
  %1035 = vmatprep.subr.mxu0 %v339
  %1036 = vmatpush1.msra.mxu0 %v338
  %1037 = vmatprep.subr.mxu0 %v342
  %1038 = vmatpush1.msra.mxu0 %v341
  %1039 = vmatprep.subr.mxu0 %v345
  %1040 = vmatpush1.msra.mxu0 %v344
  %1041 = vmatprep.subr.mxu0 %v348
  %1042 = vmatpush1.msra.mxu0 %v347
  %1043 = vmatprep.subr.mxu0 %v351
  %1044 = vmatpush1.msra.mxu0 %v350
  %1045 = vmatprep.subr.mxu0 0.0
  %1046 = vmatpush1.msra.mxu0 0.0
  %1047 = vmatprep.subr.mxu0 0.0
  %1048 = vmatpush1.msra.mxu0 0.0
  %1049 = vmatprep.subr.mxu0 0.0
  %1050 = vmatpush1.msra.mxu0 0.0
  %1051 = vmatprep.subr.mxu0 0.0
  %1052 = vmatpush1.msra.mxu0 0.0
  %1053 = vmatprep.subr.mxu0 0.0
  %1054 = vmatpush1.msra.mxu0 0.0
  %1055 = vmatprep.subr.mxu0 0.0
  %1056 = vmatpush1.msra.mxu0 0.0
  %1057 = vmatprep.subr.mxu0 0.0
  %1058 = vmatpush1.msra.mxu0 0.0
  %1059 = vmatprep.subr.mxu0 0.0
  %1060 = vmatpush1.msra.mxu0 0.0
  %1061 = vmatprep.subr.mxu0 0.0
  %1062 = vmatpush1.msra.mxu0 0.0
  %1063 = vmatprep.subr.mxu0 0.0
  %1064 = vmatpush1.msra.mxu0 0.0
  %1065 = vmatprep.subr.mxu0 0.0
  %1066 = vmatpush1.msra.mxu0 0.0
  %1067 = vmatprep.subr.mxu0 0.0
  %1068 = vmatpush1.msra.mxu0 0.0
  %1069 = vmatprep.subr.mxu0 0.0
  %1070 = vmatpush1.msra.mxu0 0.0
  %1071 = vmatprep.subr.mxu0 0.0
  %1072 = vmatpush1.msra.mxu0 0.0
  %1073 = vmatprep.subr.mxu0 0.0
  %1074 = vmatpush1.msra.mxu0 0.0
  %1075 = vmatprep.subr.mxu0 0.0
  %1076 = vmatpush1.msra.mxu0 0.0
  %1077 = vmatprep.mubr.f32.mxu0 0.0
  %1078 = vmatmul.mubr.f32.gmra.mrb[0].mxu0 %v1012
  %v1079 = vpop.f32.mrb[0].mxu0
  %v1080 = vadd.f32 0.0, %v1079
  %v1081 = vpop.f32.mrb[0].mxu0
  %v1082 = vadd.f32 0.0, %v1081
  %1083 = vdwg.mxu0
  %1084 = vmatprep.subr.mxu0 0.0
  %1085 = vmatpush1.msra.mxu0 %v307
  %1086 = vmatprep.subr.mxu0 0.0
  %1087 = vmatpush1.msra.mxu0 %v310
  %1088 = vmatprep.subr.mxu0 0.0
  %1089 = vmatpush1.msra.mxu0 %v313
  %1090 = vmatprep.subr.mxu0 0.0
  %1091 = vmatpush1.msra.mxu0 %v316
  %1092 = vmatprep.subr.mxu0 0.0
  %1093 = vmatpush1.msra.mxu0 %v319
  %1094 = vmatprep.subr.mxu0 0.0
  %1095 = vmatpush1.msra.mxu0 %v322
  %1096 = vmatprep.subr.mxu0 0.0
  %1097 = vmatpush1.msra.mxu0 %v325
  %1098 = vmatprep.subr.mxu0 0.0
  %1099 = vmatpush1.msra.mxu0 %v328
  %1100 = vmatprep.subr.mxu0 0.0
  %1101 = vmatpush1.msra.mxu0 %v331
  %1102 = vmatprep.subr.mxu0 0.0
  %1103 = vmatpush1.msra.mxu0 %v334
  %1104 = vmatprep.subr.mxu0 0.0
  %1105 = vmatpush1.msra.mxu0 %v337
  %1106 = vmatprep.subr.mxu0 0.0
  %1107 = vmatpush1.msra.mxu0 %v340
  %1108 = vmatprep.subr.mxu0 0.0
  %1109 = vmatpush1.msra.mxu0 %v343
  %1110 = vmatprep.subr.mxu0 0.0
  %1111 = vmatpush1.msra.mxu0 %v346
  %1112 = vmatprep.subr.mxu0 0.0
  %1113 = vmatpush1.msra.mxu0 %v349
  %1114 = vmatprep.subr.mxu0 0.0
  %1115 = vmatpush1.msra.mxu0 %v352
  %1116 = vmatprep.subr.mxu0 0.0
  %1117 = vmatpush1.msra.mxu0 0.0
  %1118 = vmatprep.subr.mxu0 0.0
  %1119 = vmatpush1.msra.mxu0 0.0
  %1120 = vmatprep.subr.mxu0 0.0
  %1121 = vmatpush1.msra.mxu0 0.0
  %1122 = vmatprep.subr.mxu0 0.0
  %1123 = vmatpush1.msra.mxu0 0.0
  %1124 = vmatprep.subr.mxu0 0.0
  %1125 = vmatpush1.msra.mxu0 0.0
  %1126 = vmatprep.subr.mxu0 0.0
  %1127 = vmatpush1.msra.mxu0 0.0
  %1128 = vmatprep.subr.mxu0 0.0
  %1129 = vmatpush1.msra.mxu0 0.0
  %1130 = vmatprep.subr.mxu0 0.0
  %1131 = vmatpush1.msra.mxu0 0.0
  %1132 = vmatprep.subr.mxu0 0.0
  %1133 = vmatpush1.msra.mxu0 0.0
  %1134 = vmatprep.subr.mxu0 0.0
  %1135 = vmatpush1.msra.mxu0 0.0
  %1136 = vmatprep.subr.mxu0 0.0
  %1137 = vmatpush1.msra.mxu0 0.0
  %1138 = vmatprep.subr.mxu0 0.0
  %1139 = vmatpush1.msra.mxu0 0.0
  %1140 = vmatprep.subr.mxu0 0.0
  %1141 = vmatpush1.msra.mxu0 0.0
  %1142 = vmatprep.subr.mxu0 0.0
  %1143 = vmatpush1.msra.mxu0 0.0
  %1144 = vmatprep.subr.mxu0 0.0
  %1145 = vmatpush1.msra.mxu0 0.0
  %1146 = vmatprep.subr.mxu0 0.0
  %1147 = vmatpush1.msra.mxu0 0.0
  %1148 = vmatprep.mubr.f32.mxu0 0.0
  %1149 = vmatmul.mubr.f32.gmra.mrb[0].mxu0 %v1012
  %v1150 = vpop.f32.mrb[0].mxu0
  %v1151 = vadd.f32 0.0, %v1150
  %v1152 = vpop.f32.mrb[0].mxu0
  %1153 = vdwg.mxu0
  %v1154 = vadd.f32 %v178, %v1080
  %v1155 = vxor.u32 %v1154, 2147483648
  %v1156 = vmul.f32 %v1155, 1.442695
  %v1157 = vpow.pop %v1156
  %v1158 = vadd.f32 %v1157, 1.0
  %v1159 = vrcp.pop %v1158
  %v1160 = vmul.f32 1.0, %v1159
  %v1161 = vadd.f32 %v180, %v1082
  %v1162 = vxor.u32 %v1161, 2147483648
  %v1163 = vmul.f32 %v1162, 1.442695
  %v1164 = vpow.pop %v1163
  %v1165 = vadd.f32 %v1164, 1.0
  %v1166 = vrcp.pop %v1165
  %v1167 = vmul.f32 1.0, %v1166
  %v1168 = vadd.f32 %v1151, %v358
  %v1169 = vmul.f32 %v1160, %v1168
  %v1170 = vadd.f32 %v287, %v1169
  %v1171 = vtanh.pop %v1170
  %v1172 = vsub.f32 1.0, %v1167
  %v1173 = vmul.f32 %v1172, %v1171
  %v1174 = vmul.f32 %v1167, %v1012
  %v1175 = vadd.f32 %v1173, %v1174
  %1176 = vmatprep.subr.mxu0 %v306
  %1177 = vmatpush1.msra.mxu0 %v305
  %1178 = vmatprep.subr.mxu0 %v309
  %1179 = vmatpush1.msra.mxu0 %v308
  %1180 = vmatprep.subr.mxu0 %v312
  %1181 = vmatpush1.msra.mxu0 %v311
  %1182 = vmatprep.subr.mxu0 %v315
  %1183 = vmatpush1.msra.mxu0 %v314
  %1184 = vmatprep.subr.mxu0 %v318
  %1185 = vmatpush1.msra.mxu0 %v317
  %1186 = vmatprep.subr.mxu0 %v321
  %1187 = vmatpush1.msra.mxu0 %v320
  %1188 = vmatprep.subr.mxu0 %v324
  %1189 = vmatpush1.msra.mxu0 %v323
  %1190 = vmatprep.subr.mxu0 %v327
  %1191 = vmatpush1.msra.mxu0 %v326
  %1192 = vmatprep.subr.mxu0 %v330
  %1193 = vmatpush1.msra.mxu0 %v329
  %1194 = vmatprep.subr.mxu0 %v333
  %1195 = vmatpush1.msra.mxu0 %v332
  %1196 = vmatprep.subr.mxu0 %v336
  %1197 = vmatpush1.msra.mxu0 %v335
  %1198 = vmatprep.subr.mxu0 %v339
  %1199 = vmatpush1.msra.mxu0 %v338
  %1200 = vmatprep.subr.mxu0 %v342
  %1201 = vmatpush1.msra.mxu0 %v341
  %1202 = vmatprep.subr.mxu0 %v345
  %1203 = vmatpush1.msra.mxu0 %v344
  %1204 = vmatprep.subr.mxu0 %v348
  %1205 = vmatpush1.msra.mxu0 %v347
  %1206 = vmatprep.subr.mxu0 %v351
  %1207 = vmatpush1.msra.mxu0 %v350
  %1208 = vmatprep.subr.mxu0 0.0
  %1209 = vmatpush1.msra.mxu0 0.0
  %1210 = vmatprep.subr.mxu0 0.0
  %1211 = vmatpush1.msra.mxu0 0.0
  %1212 = vmatprep.subr.mxu0 0.0
  %1213 = vmatpush1.msra.mxu0 0.0
  %1214 = vmatprep.subr.mxu0 0.0
  %1215 = vmatpush1.msra.mxu0 0.0
  %1216 = vmatprep.subr.mxu0 0.0
  %1217 = vmatpush1.msra.mxu0 0.0
  %1218 = vmatprep.subr.mxu0 0.0
  %1219 = vmatpush1.msra.mxu0 0.0
  %1220 = vmatprep.subr.mxu0 0.0
  %1221 = vmatpush1.msra.mxu0 0.0
  %1222 = vmatprep.subr.mxu0 0.0
  %1223 = vmatpush1.msra.mxu0 0.0
  %1224 = vmatprep.subr.mxu0 0.0
  %1225 = vmatpush1.msra.mxu0 0.0
  %1226 = vmatprep.subr.mxu0 0.0
  %1227 = vmatpush1.msra.mxu0 0.0
  %1228 = vmatprep.subr.mxu0 0.0
  %1229 = vmatpush1.msra.mxu0 0.0
  %1230 = vmatprep.subr.mxu0 0.0
  %1231 = vmatpush1.msra.mxu0 0.0
  %1232 = vmatprep.subr.mxu0 0.0
  %1233 = vmatpush1.msra.mxu0 0.0
  %1234 = vmatprep.subr.mxu0 0.0
  %1235 = vmatpush1.msra.mxu0 0.0
  %1236 = vmatprep.subr.mxu0 0.0
  %1237 = vmatpush1.msra.mxu0 0.0
  %1238 = vmatprep.subr.mxu0 0.0
  %1239 = vmatpush1.msra.mxu0 0.0
  %1240 = vmatprep.mubr.f32.mxu0 0.0
  %1241 = vmatmul.mubr.f32.gmra.mrb[0].mxu0 %v1175
  %v1242 = vpop.f32.mrb[0].mxu0
  %v1243 = vadd.f32 0.0, %v1242
  %v1244 = vpop.f32.mrb[0].mxu0
  %v1245 = vadd.f32 0.0, %v1244
  %1246 = vdwg.mxu0
  %1247 = vmatprep.subr.mxu0 0.0
  %1248 = vmatpush1.msra.mxu0 %v307
  %1249 = vmatprep.subr.mxu0 0.0
  %1250 = vmatpush1.msra.mxu0 %v310
  %1251 = vmatprep.subr.mxu0 0.0
  %1252 = vmatpush1.msra.mxu0 %v313
  %1253 = vmatprep.subr.mxu0 0.0
  %1254 = vmatpush1.msra.mxu0 %v316
  %1255 = vmatprep.subr.mxu0 0.0
  %1256 = vmatpush1.msra.mxu0 %v319
  %1257 = vmatprep.subr.mxu0 0.0
  %1258 = vmatpush1.msra.mxu0 %v322
  %1259 = vmatprep.subr.mxu0 0.0
  %1260 = vmatpush1.msra.mxu0 %v325
  %1261 = vmatprep.subr.mxu0 0.0
  %1262 = vmatpush1.msra.mxu0 %v328
  %1263 = vmatprep.subr.mxu0 0.0
  %1264 = vmatpush1.msra.mxu0 %v331
  %1265 = vmatprep.subr.mxu0 0.0
  %1266 = vmatpush1.msra.mxu0 %v334
  %1267 = vmatprep.subr.mxu0 0.0
  %1268 = vmatpush1.msra.mxu0 %v337
  %1269 = vmatprep.subr.mxu0 0.0
  %1270 = vmatpush1.msra.mxu0 %v340
  %1271 = vmatprep.subr.mxu0 0.0
  %1272 = vmatpush1.msra.mxu0 %v343
  %1273 = vmatprep.subr.mxu0 0.0
  %1274 = vmatpush1.msra.mxu0 %v346
  %1275 = vmatprep.subr.mxu0 0.0
  %1276 = vmatpush1.msra.mxu0 %v349
  %1277 = vmatprep.subr.mxu0 0.0
  %1278 = vmatpush1.msra.mxu0 %v352
  %1279 = vmatprep.subr.mxu0 0.0
  %1280 = vmatpush1.msra.mxu0 0.0
  %1281 = vmatprep.subr.mxu0 0.0
  %1282 = vmatpush1.msra.mxu0 0.0
  %1283 = vmatprep.subr.mxu0 0.0
  %1284 = vmatpush1.msra.mxu0 0.0
  %1285 = vmatprep.subr.mxu0 0.0
  %1286 = vmatpush1.msra.mxu0 0.0
  %1287 = vmatprep.subr.mxu0 0.0
  %1288 = vmatpush1.msra.mxu0 0.0
  %1289 = vmatprep.subr.mxu0 0.0
  %1290 = vmatpush1.msra.mxu0 0.0
  %1291 = vmatprep.subr.mxu0 0.0
  %1292 = vmatpush1.msra.mxu0 0.0
  %1293 = vmatprep.subr.mxu0 0.0
  %1294 = vmatpush1.msra.mxu0 0.0
  %1295 = vmatprep.subr.mxu0 0.0
  %1296 = vmatpush1.msra.mxu0 0.0
  %1297 = vmatprep.subr.mxu0 0.0
  %1298 = vmatpush1.msra.mxu0 0.0
  %1299 = vmatprep.subr.mxu0 0.0
  %1300 = vmatpush1.msra.mxu0 0.0
  %1301 = vmatprep.subr.mxu0 0.0
  %1302 = vmatpush1.msra.mxu0 0.0
  %1303 = vmatprep.subr.mxu0 0.0
  %1304 = vmatpush1.msra.mxu0 0.0
  %1305 = vmatprep.subr.mxu0 0.0
  %1306 = vmatpush1.msra.mxu0 0.0
  %1307 = vmatprep.subr.mxu0 0.0
  %1308 = vmatpush1.msra.mxu0 0.0
  %1309 = vmatprep.subr.mxu0 0.0
  %1310 = vmatpush1.msra.mxu0 0.0
  %1311 = vmatprep.mubr.f32.mxu0 0.0
  %1312 = vmatmul.mubr.f32.gmra.mrb[0].mxu0 %v1175
  %v1313 = vpop.f32.mrb[0].mxu0
  %v1314 = vadd.f32 0.0, %v1313
  %v1315 = vpop.f32.mrb[0].mxu0
  %1316 = vdwg.mxu0
  %v1317 = vadd.f32 %v184, %v1243
  %v1318 = vxor.u32 %v1317, 2147483648
  %v1319 = vmul.f32 %v1318, 1.442695
  %v1320 = vpow.pop %v1319
  %v1321 = vadd.f32 %v1320, 1.0
  %v1322 = vrcp.pop %v1321
  %v1323 = vmul.f32 1.0, %v1322
  %v1324 = vadd.f32 %v186, %v1245
  %v1325 = vxor.u32 %v1324, 2147483648
  %v1326 = vmul.f32 %v1325, 1.442695
  %v1327 = vpow.pop %v1326
  %v1328 = vadd.f32 %v1327, 1.0
  %v1329 = vrcp.pop %v1328
  %v1330 = vmul.f32 1.0, %v1329
  %v1331 = vadd.f32 %v1314, %v358
  %v1332 = vmul.f32 %v1323, %v1331
  %v1333 = vadd.f32 %v292, %v1332
  %v1334 = vtanh.pop %v1333
  %v1335 = vsub.f32 1.0, %v1330
  %v1336 = vmul.f32 %v1335, %v1334
  %v1337 = vmul.f32 %v1330, %v1175
  %v1338 = vadd.f32 %v1336, %v1337
  %1339 = vmatprep.subr.mxu0 %v306
  %1340 = vmatpush1.msra.mxu0 %v305
  %1341 = vmatprep.subr.mxu0 %v309
  %1342 = vmatpush1.msra.mxu0 %v308
  %1343 = vmatprep.subr.mxu0 %v312
  %1344 = vmatpush1.msra.mxu0 %v311
  %1345 = vmatprep.subr.mxu0 %v315
  %1346 = vmatpush1.msra.mxu0 %v314
  %1347 = vmatprep.subr.mxu0 %v318
  %1348 = vmatpush1.msra.mxu0 %v317
  %1349 = vmatprep.subr.mxu0 %v321
  %1350 = vmatpush1.msra.mxu0 %v320
  %1351 = vmatprep.subr.mxu0 %v324
  %1352 = vmatpush1.msra.mxu0 %v323
  %1353 = vmatprep.subr.mxu0 %v327
  %1354 = vmatpush1.msra.mxu0 %v326
  %1355 = vmatprep.subr.mxu0 %v330
  %1356 = vmatpush1.msra.mxu0 %v329
  %1357 = vmatprep.subr.mxu0 %v333
  %1358 = vmatpush1.msra.mxu0 %v332
  %1359 = vmatprep.subr.mxu0 %v336
  %1360 = vmatpush1.msra.mxu0 %v335
  %1361 = vmatprep.subr.mxu0 %v339
  %1362 = vmatpush1.msra.mxu0 %v338
  %1363 = vmatprep.subr.mxu0 %v342
  %1364 = vmatpush1.msra.mxu0 %v341
  %1365 = vmatprep.subr.mxu0 %v345
  %1366 = vmatpush1.msra.mxu0 %v344
  %1367 = vmatprep.subr.mxu0 %v348
  %1368 = vmatpush1.msra.mxu0 %v347
  %1369 = vmatprep.subr.mxu0 %v351
  %1370 = vmatpush1.msra.mxu0 %v350
  %1371 = vmatprep.subr.mxu0 0.0
  %1372 = vmatpush1.msra.mxu0 0.0
  %1373 = vmatprep.subr.mxu0 0.0
  %1374 = vmatpush1.msra.mxu0 0.0
  %1375 = vmatprep.subr.mxu0 0.0
  %1376 = vmatpush1.msra.mxu0 0.0
  %1377 = vmatprep.subr.mxu0 0.0
  %1378 = vmatpush1.msra.mxu0 0.0
  %1379 = vmatprep.subr.mxu0 0.0
  %1380 = vmatpush1.msra.mxu0 0.0
  %1381 = vmatprep.subr.mxu0 0.0
  %1382 = vmatpush1.msra.mxu0 0.0
  %1383 = vmatprep.subr.mxu0 0.0
  %1384 = vmatpush1.msra.mxu0 0.0
  %1385 = vmatprep.subr.mxu0 0.0
  %1386 = vmatpush1.msra.mxu0 0.0
  %1387 = vmatprep.subr.mxu0 0.0
  %1388 = vmatpush1.msra.mxu0 0.0
  %1389 = vmatprep.subr.mxu0 0.0
  %1390 = vmatpush1.msra.mxu0 0.0
  %1391 = vmatprep.subr.mxu0 0.0
  %1392 = vmatpush1.msra.mxu0 0.0
  %1393 = vmatprep.subr.mxu0 0.0
  %1394 = vmatpush1.msra.mxu0 0.0
  %1395 = vmatprep.subr.mxu0 0.0
  %1396 = vmatpush1.msra.mxu0 0.0
  %1397 = vmatprep.subr.mxu0 0.0
  %1398 = vmatpush1.msra.mxu0 0.0
  %1399 = vmatprep.subr.mxu0 0.0
  %1400 = vmatpush1.msra.mxu0 0.0
  %1401 = vmatprep.subr.mxu0 0.0
  %1402 = vmatpush1.msra.mxu0 0.0
  %1403 = vmatprep.mubr.f32.mxu0 0.0
  %1404 = vmatmul.mubr.f32.gmra.mrb[0].mxu0 %v1338
  %v1405 = vpop.f32.mrb[0].mxu0
  %v1406 = vadd.f32 0.0, %v1405
  %v1407 = vpop.f32.mrb[0].mxu0
  %v1408 = vadd.f32 0.0, %v1407
  %1409 = vdwg.mxu0
  %1410 = vmatprep.subr.mxu0 0.0
  %1411 = vmatpush1.msra.mxu0 %v307
  %1412 = vmatprep.subr.mxu0 0.0
  %1413 = vmatpush1.msra.mxu0 %v310
  %1414 = vmatprep.subr.mxu0 0.0
  %1415 = vmatpush1.msra.mxu0 %v313
  %1416 = vmatprep.subr.mxu0 0.0
  %1417 = vmatpush1.msra.mxu0 %v316
  %1418 = vmatprep.subr.mxu0 0.0
  %1419 = vmatpush1.msra.mxu0 %v319
  %1420 = vmatprep.subr.mxu0 0.0
  %1421 = vmatpush1.msra.mxu0 %v322
  %1422 = vmatprep.subr.mxu0 0.0
  %1423 = vmatpush1.msra.mxu0 %v325
  %1424 = vmatprep.subr.mxu0 0.0
  %1425 = vmatpush1.msra.mxu0 %v328
  %1426 = vmatprep.subr.mxu0 0.0
  %1427 = vmatpush1.msra.mxu0 %v331
  %1428 = vmatprep.subr.mxu0 0.0
  %1429 = vmatpush1.msra.mxu0 %v334
  %1430 = vmatprep.subr.mxu0 0.0
  %1431 = vmatpush1.msra.mxu0 %v337
  %1432 = vmatprep.subr.mxu0 0.0
  %1433 = vmatpush1.msra.mxu0 %v340
  %1434 = vmatprep.subr.mxu0 0.0
  %1435 = vmatpush1.msra.mxu0 %v343
  %1436 = vmatprep.subr.mxu0 0.0
  %1437 = vmatpush1.msra.mxu0 %v346
  %1438 = vmatprep.subr.mxu0 0.0
  %1439 = vmatpush1.msra.mxu0 %v349
  %1440 = vmatprep.subr.mxu0 0.0
  %1441 = vmatpush1.msra.mxu0 %v352
  %1442 = vmatprep.subr.mxu0 0.0
  %1443 = vmatpush1.msra.mxu0 0.0
  %1444 = vmatprep.subr.mxu0 0.0
  %1445 = vmatpush1.msra.mxu0 0.0
  %1446 = vmatprep.subr.mxu0 0.0
  %1447 = vmatpush1.msra.mxu0 0.0
  %1448 = vmatprep.subr.mxu0 0.0
  %1449 = vmatpush1.msra.mxu0 0.0
  %1450 = vmatprep.subr.mxu0 0.0
  %1451 = vmatpush1.msra.mxu0 0.0
  %1452 = vmatprep.subr.mxu0 0.0
  %1453 = vmatpush1.msra.mxu0 0.0
  %1454 = vmatprep.subr.mxu0 0.0
  %1455 = vmatpush1.msra.mxu0 0.0
  %1456 = vmatprep.subr.mxu0 0.0
  %1457 = vmatpush1.msra.mxu0 0.0
  %1458 = vmatprep.subr.mxu0 0.0
  %1459 = vmatpush1.msra.mxu0 0.0
  %1460 = vmatprep.subr.mxu0 0.0
  %1461 = vmatpush1.msra.mxu0 0.0
  %1462 = vmatprep.subr.mxu0 0.0
  %1463 = vmatpush1.msra.mxu0 0.0
  %1464 = vmatprep.subr.mxu0 0.0
  %1465 = vmatpush1.msra.mxu0 0.0
  %1466 = vmatprep.subr.mxu0 0.0
  %1467 = vmatpush1.msra.mxu0 0.0
  %1468 = vmatprep.subr.mxu0 0.0
  %1469 = vmatpush1.msra.mxu0 0.0
  %1470 = vmatprep.subr.mxu0 0.0
  %1471 = vmatpush1.msra.mxu0 0.0
  %1472 = vmatprep.subr.mxu0 0.0
  %1473 = vmatpush1.msra.mxu0 0.0
  %1474 = vmatprep.mubr.f32.mxu0 0.0
  %1475 = vmatmul.mubr.f32.gmra.mrb[0].mxu0 %v1338
  %v1476 = vpop.f32.mrb[0].mxu0
  %v1477 = vadd.f32 0.0, %v1476
  %v1478 = vpop.f32.mrb[0].mxu0
  %1479 = vdwg.mxu0
  %v1480 = vadd.f32 %v190, %v1406
  %v1481 = vxor.u32 %v1480, 2147483648
  %v1482 = vmul.f32 %v1481, 1.442695
  %v1483 = vpow.pop %v1482
  %v1484 = vadd.f32 %v1483, 1.0
  %v1485 = vrcp.pop %v1484
  %v1486 = vmul.f32 1.0, %v1485
  %v1487 = vadd.f32 %v192, %v1408
  %v1488 = vxor.u32 %v1487, 2147483648
  %v1489 = vmul.f32 %v1488, 1.442695
  %v1490 = vpow.pop %v1489
  %v1491 = vadd.f32 %v1490, 1.0
  %v1492 = vrcp.pop %v1491
  %v1493 = vmul.f32 1.0, %v1492
  %v1494 = vadd.f32 %v1477, %v358
  %v1495 = vmul.f32 %v1486, %v1494
  %v1496 = vadd.f32 %v297, %v1495
  %v1497 = vtanh.pop %v1496
  %v1498 = vsub.f32 1.0, %v1493
  %v1499 = vmul.f32 %v1498, %v1497
  %v1500 = vmul.f32 %v1493, %v1338
  %v1501 = vadd.f32 %v1499, %v1500
  %1502 = vmatprep.subr.mxu0 %v306
  %1503 = vmatpush1.msra.mxu0 %v305
  %1504 = vmatprep.subr.mxu0 %v309
  %1505 = vmatpush1.msra.mxu0 %v308
  %1506 = vmatprep.subr.mxu0 %v312
  %1507 = vmatpush1.msra.mxu0 %v311
  %1508 = vmatprep.subr.mxu0 %v315
  %1509 = vmatpush1.msra.mxu0 %v314
  %1510 = vmatprep.subr.mxu0 %v318
  %1511 = vmatpush1.msra.mxu0 %v317
  %1512 = vmatprep.subr.mxu0 %v321
  %1513 = vmatpush1.msra.mxu0 %v320
  %1514 = vmatprep.subr.mxu0 %v324
  %1515 = vmatpush1.msra.mxu0 %v323
  %1516 = vmatprep.subr.mxu0 %v327
  %1517 = vmatpush1.msra.mxu0 %v326
  %1518 = vmatprep.subr.mxu0 %v330
  %1519 = vmatpush1.msra.mxu0 %v329
  %1520 = vmatprep.subr.mxu0 %v333
  %1521 = vmatpush1.msra.mxu0 %v332
  %1522 = vmatprep.subr.mxu0 %v336
  %1523 = vmatpush1.msra.mxu0 %v335
  %1524 = vmatprep.subr.mxu0 %v339
  %1525 = vmatpush1.msra.mxu0 %v338
  %1526 = vmatprep.subr.mxu0 %v342
  %1527 = vmatpush1.msra.mxu0 %v341
  %1528 = vmatprep.subr.mxu0 %v345
  %1529 = vmatpush1.msra.mxu0 %v344
  %1530 = vmatprep.subr.mxu0 %v348
  %1531 = vmatpush1.msra.mxu0 %v347
  %1532 = vmatprep.subr.mxu0 %v351
  %1533 = vmatpush1.msra.mxu0 %v350
  %1534 = vmatprep.subr.mxu0 0.0
  %1535 = vmatpush1.msra.mxu0 0.0
  %1536 = vmatprep.subr.mxu0 0.0
  %1537 = vmatpush1.msra.mxu0 0.0
  %1538 = vmatprep.subr.mxu0 0.0
  %1539 = vmatpush1.msra.mxu0 0.0
  %1540 = vmatprep.subr.mxu0 0.0
  %1541 = vmatpush1.msra.mxu0 0.0
  %1542 = vmatprep.subr.mxu0 0.0
  %1543 = vmatpush1.msra.mxu0 0.0
  %1544 = vmatprep.subr.mxu0 0.0
  %1545 = vmatpush1.msra.mxu0 0.0
  %1546 = vmatprep.subr.mxu0 0.0
  %1547 = vmatpush1.msra.mxu0 0.0
  %1548 = vmatprep.subr.mxu0 0.0
  %1549 = vmatpush1.msra.mxu0 0.0
  %1550 = vmatprep.subr.mxu0 0.0
  %1551 = vmatpush1.msra.mxu0 0.0
  %1552 = vmatprep.subr.mxu0 0.0
  %1553 = vmatpush1.msra.mxu0 0.0
  %1554 = vmatprep.subr.mxu0 0.0
  %1555 = vmatpush1.msra.mxu0 0.0
  %1556 = vmatprep.subr.mxu0 0.0
  %1557 = vmatpush1.msra.mxu0 0.0
  %1558 = vmatprep.subr.mxu0 0.0
  %1559 = vmatpush1.msra.mxu0 0.0
  %1560 = vmatprep.subr.mxu0 0.0
  %1561 = vmatpush1.msra.mxu0 0.0
  %1562 = vmatprep.subr.mxu0 0.0
  %1563 = vmatpush1.msra.mxu0 0.0
  %1564 = vmatprep.subr.mxu0 0.0
  %1565 = vmatpush1.msra.mxu0 0.0
  %1566 = vmatprep.mubr.f32.mxu0 0.0
  %1567 = vmatmul.mubr.f32.gmra.mrb[0].mxu0 %v1501
  %v1568 = vpop.f32.mrb[0].mxu0
  %v1569 = vadd.f32 0.0, %v1568
  %v1570 = vpop.f32.mrb[0].mxu0
  %v1571 = vadd.f32 0.0, %v1570
  %1572 = vdwg.mxu0
  %1573 = vmatprep.subr.mxu0 0.0
  %1574 = vmatpush1.msra.mxu0 %v307
  %1575 = vmatprep.subr.mxu0 0.0
  %1576 = vmatpush1.msra.mxu0 %v310
  %1577 = vmatprep.subr.mxu0 0.0
  %1578 = vmatpush1.msra.mxu0 %v313
  %1579 = vmatprep.subr.mxu0 0.0
  %1580 = vmatpush1.msra.mxu0 %v316
  %1581 = vmatprep.subr.mxu0 0.0
  %1582 = vmatpush1.msra.mxu0 %v319
  %1583 = vmatprep.subr.mxu0 0.0
  %1584 = vmatpush1.msra.mxu0 %v322
  %1585 = vmatprep.subr.mxu0 0.0
  %1586 = vmatpush1.msra.mxu0 %v325
  %1587 = vmatprep.subr.mxu0 0.0
  %1588 = vmatpush1.msra.mxu0 %v328
  %1589 = vmatprep.subr.mxu0 0.0
  %1590 = vmatpush1.msra.mxu0 %v331
  %1591 = vmatprep.subr.mxu0 0.0
  %1592 = vmatpush1.msra.mxu0 %v334
  %1593 = vmatprep.subr.mxu0 0.0
  %1594 = vmatpush1.msra.mxu0 %v337
  %1595 = vmatprep.subr.mxu0 0.0
  %1596 = vmatpush1.msra.mxu0 %v340
  %1597 = vmatprep.subr.mxu0 0.0
  %1598 = vmatpush1.msra.mxu0 %v343
  %1599 = vmatprep.subr.mxu0 0.0
  %1600 = vmatpush1.msra.mxu0 %v346
  %1601 = vmatprep.subr.mxu0 0.0
  %1602 = vmatpush1.msra.mxu0 %v349
  %1603 = vmatprep.subr.mxu0 0.0
  %1604 = vmatpush1.msra.mxu0 %v352
  %1605 = vmatprep.subr.mxu0 0.0
  %1606 = vmatpush1.msra.mxu0 0.0
  %1607 = vmatprep.subr.mxu0 0.0
  %1608 = vmatpush1.msra.mxu0 0.0
  %1609 = vmatprep.subr.mxu0 0.0
  %1610 = vmatpush1.msra.mxu0 0.0
  %1611 = vmatprep.subr.mxu0 0.0
  %1612 = vmatpush1.msra.mxu0 0.0
  %1613 = vmatprep.subr.mxu0 0.0
  %1614 = vmatpush1.msra.mxu0 0.0
  %1615 = vmatprep.subr.mxu0 0.0
  %1616 = vmatpush1.msra.mxu0 0.0
  %1617 = vmatprep.subr.mxu0 0.0
  %1618 = vmatpush1.msra.mxu0 0.0
  %1619 = vmatprep.subr.mxu0 0.0
  %1620 = vmatpush1.msra.mxu0 0.0
  %1621 = vmatprep.subr.mxu0 0.0
  %1622 = vmatpush1.msra.mxu0 0.0
  %1623 = vmatprep.subr.mxu0 0.0
  %1624 = vmatpush1.msra.mxu0 0.0
  %1625 = vmatprep.subr.mxu0 0.0
  %1626 = vmatpush1.msra.mxu0 0.0
  %1627 = vmatprep.subr.mxu0 0.0
  %1628 = vmatpush1.msra.mxu0 0.0
  %1629 = vmatprep.subr.mxu0 0.0
  %1630 = vmatpush1.msra.mxu0 0.0
  %1631 = vmatprep.subr.mxu0 0.0
  %1632 = vmatpush1.msra.mxu0 0.0
  %1633 = vmatprep.subr.mxu0 0.0
  %1634 = vmatpush1.msra.mxu0 0.0
  %1635 = vmatprep.subr.mxu0 0.0
  %1636 = vmatpush1.msra.mxu0 0.0
  %1637 = vmatprep.mubr.f32.mxu0 0.0
  %1638 = vmatmul.mubr.f32.gmra.mrb[0].mxu0 %v1501
  %v1639 = vpop.f32.mrb[0].mxu0
  %v1640 = vadd.f32 0.0, %v1639
  %v1641 = vpop.f32.mrb[0].mxu0
  %1642 = vdwg.mxu0
  %v1643 = vadd.f32 %v196, %v1569
  %v1644 = vxor.u32 %v1643, 2147483648
  %v1645 = vmul.f32 %v1644, 1.442695
  %v1646 = vpow.pop %v1645
  %v1647 = vadd.f32 %v1646, 1.0
  %v1648 = vrcp.pop %v1647
  %v1649 = vmul.f32 1.0, %v1648
  %v1650 = vadd.f32 %v198, %v1571
  %v1651 = vxor.u32 %v1650, 2147483648
  %v1652 = vmul.f32 %v1651, 1.442695
  %v1653 = vpow.pop %v1652
  %v1654 = vadd.f32 %v1653, 1.0
  %v1655 = vrcp.pop %v1654
  %v1656 = vmul.f32 1.0, %v1655
  %v1657 = vadd.f32 %v1640, %v358
  %v1658 = vmul.f32 %v1649, %v1657
  %v1659 = vadd.f32 %v302, %v1658
  %v1660 = vtanh.pop %v1659
  %v1661 = vsub.f32 1.0, %v1656
  %v1662 = vmul.f32 %v1661, %v1660
  %v1663 = vmul.f32 %v1656, %v1501
  %v1664 = vadd.f32 %v1662, %v1663
  %1665 = vst [vmem:[%s9] sm:$0xff] %v1664
  %v1666 = vld [vmem:[%s5] sm:$0xff]
  %v1667 = vld [vmem:[%s5 + $0x8] sm:$0xff]
  %v1668 = vld [vmem:[%s5 + $0x10] sm:$0xff]
  %v1669 = vld [vmem:[%s5 + $0x18] sm:$0xff]
  %v1670 = vld [vmem:[%s5 + $0x20] sm:$0xff]
  %v1671 = vld [vmem:[%s5 + $0x28] sm:$0xff]
  %v1672 = vld [vmem:[%s5 + $0x30] sm:$0xff]
  %v1673 = vld [vmem:[%s5 + $0x38] sm:$0xff]
  %v1674 = vld [vmem:[%s5 + $0x40] sm:$0xff]
  %v1675 = vld [vmem:[%s5 + $0x48] sm:$0xff]
  %v1676 = vld [vmem:[%s5 + $0x50] sm:$0xff]
  %v1677 = vld [vmem:[%s5 + $0x58] sm:$0xff]
  %v1678 = vld [vmem:[%s5 + $0x60] sm:$0xff]
  %v1679 = vld [vmem:[%s5 + $0x68] sm:$0xff]
  %v1680 = vld [vmem:[%s5 + $0x70] sm:$0xff]
  %v1681 = vld [vmem:[%s5 + $0x78] sm:$0xff]
  %v1682 = vld [vmem:[%s6] sm:$0x1]
  %v1684 = vlaneseq
  %v1685 = vshrl.u32 %v1684, 7
  %v1686 = vsub.s32 0, %v1685
  %v1687 = vrot.slane %v1682, %v1686
  %1689 = vmatprep.subr.mxu0 0.0
  %1690 = vmatpush1.msra.mxu0 %v1666
  %1691 = vmatprep.subr.mxu0 0.0
  %1692 = vmatpush1.msra.mxu0 %v1667
  %1693 = vmatprep.subr.mxu0 0.0
  %1694 = vmatpush1.msra.mxu0 %v1668
  %1695 = vmatprep.subr.mxu0 0.0
  %1696 = vmatpush1.msra.mxu0 %v1669
  %1697 = vmatprep.subr.mxu0 0.0
  %1698 = vmatpush1.msra.mxu0 %v1670
  %1699 = vmatprep.subr.mxu0 0.0
  %1700 = vmatpush1.msra.mxu0 %v1671
  %1701 = vmatprep.subr.mxu0 0.0
  %1702 = vmatpush1.msra.mxu0 %v1672
  %1703 = vmatprep.subr.mxu0 0.0
  %1704 = vmatpush1.msra.mxu0 %v1673
  %1705 = vmatprep.subr.mxu0 0.0
  %1706 = vmatpush1.msra.mxu0 %v1674
  %1707 = vmatprep.subr.mxu0 0.0
  %1708 = vmatpush1.msra.mxu0 %v1675
  %1709 = vmatprep.subr.mxu0 0.0
  %1710 = vmatpush1.msra.mxu0 %v1676
  %1711 = vmatprep.subr.mxu0 0.0
  %1712 = vmatpush1.msra.mxu0 %v1677
  %1713 = vmatprep.subr.mxu0 0.0
  %1714 = vmatpush1.msra.mxu0 %v1678
  %1715 = vmatprep.subr.mxu0 0.0
  %1716 = vmatpush1.msra.mxu0 %v1679
  %1717 = vmatprep.subr.mxu0 0.0
  %1718 = vmatpush1.msra.mxu0 %v1680
  %1719 = vmatprep.subr.mxu0 0.0
  %1720 = vmatpush1.msra.mxu0 %v1681
  %1721 = vmatprep.subr.mxu0 0.0
  %1722 = vmatpush1.msra.mxu0 0.0
  %1723 = vmatprep.subr.mxu0 0.0
  %1724 = vmatpush1.msra.mxu0 0.0
  %1725 = vmatprep.subr.mxu0 0.0
  %1726 = vmatpush1.msra.mxu0 0.0
  %1727 = vmatprep.subr.mxu0 0.0
  %1728 = vmatpush1.msra.mxu0 0.0
  %1729 = vmatprep.subr.mxu0 0.0
  %1730 = vmatpush1.msra.mxu0 0.0
  %1731 = vmatprep.subr.mxu0 0.0
  %1732 = vmatpush1.msra.mxu0 0.0
  %1733 = vmatprep.subr.mxu0 0.0
  %1734 = vmatpush1.msra.mxu0 0.0
  %1735 = vmatprep.subr.mxu0 0.0
  %1736 = vmatpush1.msra.mxu0 0.0
  %1737 = vmatprep.subr.mxu0 0.0
  %1738 = vmatpush1.msra.mxu0 0.0
  %1739 = vmatprep.subr.mxu0 0.0
  %1740 = vmatpush1.msra.mxu0 0.0
  %1741 = vmatprep.subr.mxu0 0.0
  %1742 = vmatpush1.msra.mxu0 0.0
  %1743 = vmatprep.subr.mxu0 0.0
  %1744 = vmatpush1.msra.mxu0 0.0
  %1745 = vmatprep.subr.mxu0 0.0
  %1746 = vmatpush1.msra.mxu0 0.0
  %1747 = vmatprep.subr.mxu0 0.0
  %1748 = vmatpush1.msra.mxu0 0.0
  %1749 = vmatprep.subr.mxu0 0.0
  %1750 = vmatpush1.msra.mxu0 0.0
  %1751 = vmatprep.subr.mxu0 0.0
  %1752 = vmatpush1.msra.mxu0 0.0
  %1753 = vmatprep.mubr.f32.mxu0 0.0
  %1754 = vmatmul.mubr.f32.gmra.mrb[0].mxu0 %v523
  %v1755 = vpop.f32.mrb[0].mxu0
  %v1756 = vadd.f32 %v1687, %v1755
  %v1757 = vpop.f32.mrb[0].mxu0
  %1758 = vmatprep.mubr.f32.mxu0 0.0
  %1759 = vmatmul.mubr.f32.gmra.mrb[0].mxu0 %v686
  %v1760 = vpop.f32.mrb[0].mxu0
  %v1761 = vadd.f32 %v1687, %v1760
  %v1762 = vpop.f32.mrb[0].mxu0
  %1763 = vmatprep.mubr.f32.mxu0 0.0
  %1764 = vmatmul.mubr.f32.gmra.mrb[0].mxu0 %v849
  %v1765 = vpop.f32.mrb[0].mxu0
  %v1766 = vadd.f32 %v1687, %v1765
  %v1767 = vpop.f32.mrb[0].mxu0
  %1768 = vmatprep.mubr.f32.mxu0 0.0
  %1769 = vmatmul.mubr.f32.gmra.mrb[0].mxu0 %v1012
  %v1770 = vpop.f32.mrb[0].mxu0
  %v1771 = vadd.f32 %v1687, %v1770
  %v1772 = vpop.f32.mrb[0].mxu0
  %1773 = vmatprep.mubr.f32.mxu0 0.0
  %1774 = vmatmul.mubr.f32.gmra.mrb[0].mxu0 %v1175
  %v1775 = vpop.f32.mrb[0].mxu0
  %v1776 = vadd.f32 %v1687, %v1775
  %v1777 = vpop.f32.mrb[0].mxu0
  %1778 = vmatprep.mubr.f32.mxu0 0.0
  %1779 = vmatmul.mubr.f32.gmra.mrb[0].mxu0 %v1338
  %v1780 = vpop.f32.mrb[0].mxu0
  %v1781 = vadd.f32 %v1687, %v1780
  %v1782 = vpop.f32.mrb[0].mxu0
  %1783 = vmatprep.mubr.f32.mxu0 0.0
  %1784 = vmatmul.mubr.f32.gmra.mrb[0].mxu0 %v1501
  %v1785 = vpop.f32.mrb[0].mxu0
  %v1786 = vadd.f32 %v1687, %v1785
  %v1787 = vpop.f32.mrb[0].mxu0
  %1788 = vmatprep.mubr.f32.mxu0 0.0
  %1789 = vmatmul.mubr.f32.gmra.mrb[0].mxu0 %v1664
  %v1790 = vpop.f32.mrb[0].mxu0
  %v1791 = vadd.f32 %v1687, %v1790
  %v1792 = vpop.f32.mrb[0].mxu0
  %1793 = vdwg.mxu0
  %1794 = vst [vmem:[%s8] sm:$0xff] %v1756
  %1795 = vst [vmem:[%s8 + $0x8] sm:$0xff] %v1761
  %1796 = vst [vmem:[%s8 + $0x10] sm:$0xff] %v1766
  %1797 = vst [vmem:[%s8 + $0x18] sm:$0xff] %v1771
  %1798 = vst [vmem:[%s8 + $0x20] sm:$0xff] %v1776
  %1799 = vst [vmem:[%s8 + $0x28] sm:$0xff] %v1781
  %1800 = vst [vmem:[%s8 + $0x30] sm:$0xff] %v1786
  %1801 = vst [vmem:[%s8 + $0x38] sm:$0xff] %v1791
  // Predicated region
  $region34: #{rnn_baseline_forward.1} parent=0 // pred_check
    _
  $region35: #{rnn_baseline_forward.1} parent=0 // pred_check_branch
    %1803 = sbr.rel (0) target = $region37
  $region36: #{rnn_baseline_forward.1} parent=0 // pred_region
    _
  $region37: #{rnn_baseline_forward.1} parent=0 // pred_fallthru
    _
  // Predicated region
  $region38: #{rnn_baseline_forward.1} parent=0 // pred_check
    _
  $region39: #{rnn_baseline_forward.1} parent=0 // pred_check_branch
    %1805 = sbr.rel (0) target = $region41
  $region40: #{rnn_baseline_forward.1} parent=0 // pred_region
    _
  $region41: #{rnn_baseline_forward.1} parent=0 // pred_fallthru
    _
  // Predicated region
  $region42: #{rnn_baseline_forward.1} parent=0 // pred_check
    _
  $region43: #{rnn_baseline_forward.1} parent=0 // pred_check_branch
    %1807 = sbr.rel (0) target = $region45
  $region44: #{rnn_baseline_forward.1} parent=0 // pred_region
    _
  $region45: #{rnn_baseline_forward.1} parent=0 // pred_fallthru
    _
  // Predicated region
  $region46: #{rnn_baseline_forward.1} parent=0 // pred_check
    _
  $region47: #{rnn_baseline_forward.1} parent=0 // pred_check_branch
    %1809 = sbr.rel (0) target = $region49
  $region48: #{rnn_baseline_forward.1} parent=0 // pred_region
    _
  $region49: #{rnn_baseline_forward.1} parent=0 // pred_fallthru
    _

</llo_original>
